<compile_context>
chip_gen: v7x
topology: tpu7x:2x2x1
jax: 0.10.0
libtpu: 0.0.40
codegen_flags: <defaults>
</compile_context>

<pallas_src>
import functools

import jax
import jax.numpy as jnp
import numpy as np
from jax.experimental import pallas as pl
from jax.experimental.pallas import tpu as pltpu


def _vsae_kernel(x_ref, eps_ref, w_enc_ref, b_enc_ref, b_dec_ref, w_dec_ref,
                 mu_ref, xrec_ref, red_ref, *, thresh):
    x_bf = x_ref[...]                                     # (TB, Dp) bf16

    # Encode (b_dec already folded into the bias): bf16 MXU matmul, f32 acc.
    mu = jnp.maximum(
        jnp.dot(x_bf, w_enc_ref[...], preferred_element_type=jnp.float32)
        + b_enc_ref[...],
        0.0)                                              # (TB, Hp) f32

    # var_flag == 0: log_var = 0 -> std = 1 -> z = mu + eps.
    z = mu + eps_ref[...].astype(jnp.float32)             # (TB, Hp) f32

    # Decode: bf16 MXU matmul, f32 accumulation.
    x_recon = (jnp.dot(z.astype(jnp.bfloat16), w_dec_ref[...],
                       preferred_element_type=jnp.float32)
               + b_dec_ref[...])                          # (TB, Dp) f32

    mu_ref[...] = mu.astype(mu_ref.dtype)
    xrec_ref[...] = x_recon.astype(xrec_ref.dtype)

    # Per-tile partial reductions packed into one lane-dense (1, 3, Hp) slab:
    #   row 0: per-column sum of mu
    #   row 1: per-column active-neuron count (mu >= 0 post-ReLU, no abs)
    #   row 2: tile l2 sum broadcast across lanes (wrapper reads lane 0)
    diff = x_recon - x_bf.astype(jnp.float32)             # padded lanes are 0
    hp = mu.shape[1]
    musum = jnp.sum(mu, axis=0, keepdims=True)                          # (1, Hp)
    actcnt = jnp.sum((mu > thresh).astype(jnp.float32),
                     axis=0, keepdims=True)                             # (1, Hp)
    l2_tile = jnp.sum(jnp.sum(diff * diff, axis=1, keepdims=True),
                      axis=0, keepdims=True)                            # (1, 1)
    l2_row = jnp.zeros((1, hp), jnp.float32) + l2_tile                  # (1, Hp)
    red_ref[...] = jnp.concatenate([musum, actcnt, l2_row], axis=0)[None]


def _round_up(n, m):
    return ((n + m - 1) // m) * m


def _vmem_limit_bytes():
    """Generation-aware VMEM budget: 75% of physical VMEM, capped at 100 MiB."""
    cap = 128 * 1024 * 1024
    try:
        cap = int(pltpu.get_tpu_info().vmem_capacity_bytes)
    except Exception:
        pass
    return min(100 * 1024 * 1024, (cap * 3) // 4)


def _pick_tile_b(batch, tile_b, dp, hp, vmem_limit):
    """Clamp tile_b to the VMEM budget, then to a multiple-of-8 divisor of B."""
    tile_b = max(8, min(tile_b, batch))
    # Rough residency: bf16 weights (double-counted for safety) + double-
    # buffered bf16 inputs + double-buffered f32 outputs + live f32 values,
    # checked against 80% of the scoped limit.
    weights = 2 * 2 * 2 * dp * hp
    per_row = 2 * 2 * (dp + hp) + 2 * 4 * (hp + dp) + 4 * (2 * hp + dp)
    budget = int(0.8 * vmem_limit) - weights
    if budget > per_row * 8:
        tile_b = min(tile_b, max(8, (budget // per_row) // 8 * 8))
    else:
        tile_b = 8
    if batch % tile_b == 0 and (tile_b % 8 == 0 or tile_b == batch):
        return tile_b
    t = (min(tile_b, batch) // 8) * 8
    while t >= 8:
        if batch % t == 0:
            return t
        t -= 8
    return batch   # tiny / ragged batch: single tile (block == full array dim)


def vsae_forward(x, eps, W_enc, b_enc, b_dec, W_dec, prior_cov,
                 kl_coeff=3e-4, thresh=1e-8, tile_b=256,
                 out_dtype=jnp.float32, return_log_var=False):
    B, D = x.shape
    H = W_enc.shape[1]
    Dp = _round_up(D, 128)
    Hp = _round_up(H, 128)
    pad_d, pad_h = Dp - D, Hp - H

    hi = jax.lax.Precision.HIGHEST
    # Fold the decoder bias into the encoder bias once, in f32:
    #   relu((x - b_dec) @ W_enc + b_enc) == relu(x @ W_enc + (b_enc - b_dec @ W_enc))
    b_enc_fold = (b_enc - jnp.dot(b_dec, W_enc, precision=hi)).astype(jnp.float32)

    # Zero-pad both feature dims to multiples of 128 (lane-dense; math no-op:
    # padded mu/z columns are relu(0+0)=0 and padded W_dec rows/cols are 0).
    x_p = jnp.pad(x, ((0, 0), (0, pad_d))) if pad_d else x
    eps_p = jnp.pad(eps, ((0, 0), (0, pad_h))) if pad_h else eps
    W_enc_p = jnp.pad(W_enc, ((0, pad_d), (0, pad_h))) if (pad_d or pad_h) else W_enc
    W_dec_p = jnp.pad(W_dec, ((0, pad_h), (0, pad_d))) if (pad_d or pad_h) else W_dec
    b_enc_p = jnp.pad(b_enc_fold, (0, pad_h)) if pad_h else b_enc_fold
    b_dec_p = jnp.pad(b_dec, (0, pad_d)) if pad_d else b_dec

    # Wrapper-side casts: bf16 activation/weight streams halve HBM read bytes.
    x_bf = x_p.astype(jnp.bfloat16)
    eps_bf = eps_p.astype(jnp.bfloat16)
    W_enc_bf = W_enc_p.astype(jnp.bfloat16)
    W_dec_bf = W_dec_p.astype(jnp.bfloat16)
    b_enc2 = b_enc_p.reshape(1, Hp).astype(jnp.float32)
    b_dec2 = b_dec_p.reshape(1, Dp).astype(jnp.float32)

    vmem_limit = _vmem_limit_bytes()
    tile_b = _pick_tile_b(B, tile_b, Dp, Hp, vmem_limit)
    nt = B // tile_b

    kernel = functools.partial(_vsae_kernel, thresh=float(thresh))
    out_shape = (
        jax.ShapeDtypeStruct((B, Hp), out_dtype),        # mu
        jax.ShapeDtypeStruct((B, Dp), out_dtype),        # x_recon
        jax.ShapeDtypeStruct((nt, 3, Hp), jnp.float32),  # packed per-tile reductions
    )

    def run(single_buffer_weights):
        if single_buffer_weights and hasattr(pl, "Buffered"):
            # Constant-index-map operands never change -> single-buffer them
            # (frees ~half of the weight VMEM; important on v7x's 64 MiB).
            def const_spec(shape):
                return pl.BlockSpec(shape, lambda i: (0, 0),
                                    pipeline_mode=pl.Buffered(1))
        else:
            def const_spec(shape):
                return pl.BlockSpec(shape, lambda i: (0, 0))

        grid_spec = pltpu.PrefetchScalarGridSpec(
            num_scalar_prefetch=0,
            grid=(nt,),
            in_specs=[
                pl.BlockSpec((tile_b, Dp), lambda i: (i, 0)),   # x (bf16, padded)
                pl.BlockSpec((tile_b, Hp), lambda i: (i, 0)),   # eps (bf16, padded)
                const_spec((Dp, Hp)),                           # W_enc (bf16)
                const_spec((1, Hp)),                            # b_enc - b_dec @ W_enc
                const_spec((1, Dp)),                            # b_dec (padded)
                const_spec((Hp, Dp)),                           # W_dec (bf16)
            ],
            out_specs=[
                pl.BlockSpec((tile_b, Hp), lambda i: (i, 0)),   # mu
                pl.BlockSpec((tile_b, Dp), lambda i: (i, 0)),   # x_recon
                pl.BlockSpec((1, 3, Hp), lambda i: (i, 0, 0)),  # packed reductions
            ],
        )
        return pl.pallas_call(
            kernel,
            out_shape=out_shape,
            grid_spec=grid_spec,
            compiler_params=pltpu.CompilerParams(
                dimension_semantics=("parallel",),
                vmem_limit_bytes=vmem_limit),
        )(x_bf, eps_bf, W_enc_bf, b_enc2, b_dec2, W_dec_bf)

    try:
        mu_p, xrec_p, red = run(single_buffer_weights=True)
    except Exception:
        # Fallback for jax builds where pipeline_mode=pl.Buffered is not
        # supported by the Mosaic pipeline emitter: plain double-buffering.
        mu_p, xrec_p, red = run(single_buffer_weights=False)

    mu = mu_p[:, :H] if pad_h else mu_p
    x_recon = xrec_p[:, :D] if pad_d else xrec_p
    # z recomputed lazily with exactly the kernel's arithmetic
    # (f32 mu + upcast bf16 eps); only materializes if the caller uses it.
    eps_h = eps_bf[:, :H] if pad_h else eps_bf
    z = mu + eps_h.astype(jnp.float32)

    # ---- KL / loss finalize in plain JAX (O(H^2) once, negligible) ----
    prec = jnp.linalg.inv(prior_cov).astype(jnp.float32)
    logdet = jnp.linalg.slogdet(prior_cov)[1].astype(jnp.float32)

    inv_b = 1.0 / B
    l2_loss = jnp.sum(red[:, 2, 0]) * inv_b
    mu_avg = jnp.sum(red[:, 0, :H], axis=0) * inv_b           # (H,)
    frac_active = jnp.sum(red[:, 1, :H], axis=0) * inv_b      # (H,)

    # var_flag == 0: var_avg == 1 -> trace_term = sum(diag(prec)); log_det_q = 0.
    trace_term = jnp.sum(jnp.diagonal(prec))
    quad_term = jnp.dot(jnp.dot(mu_avg, prec, precision=hi), mu_avg,
                        precision=hi)
    kl_loss = jnp.maximum(0.5 * (trace_term + quad_term - H + logdet), 0.0)
    loss = l2_loss + kl_coeff * kl_loss

    log_var = jnp.zeros_like(mu) if return_log_var else None  # var_flag == 0

    return {
        "loss": loss,
        "l2_loss": l2_loss,
        "kl_loss": kl_loss,
        "mu": mu,
        "log_var": log_var,
        "z": z,
        "x_recon": x_recon,
        "frac_active": frac_active,
    }


def _reference(x, eps, W_enc, b_enc, b_dec, W_dec, prior_cov, kl_coeff, thresh):
    hi = jax.lax.Precision.HIGHEST
    prec = jnp.linalg.inv(prior_cov)
    logdet = jnp.linalg.slogdet(prior_cov)[1]
    x_cent = x - b_dec
    mu = jax.nn.relu(jnp.dot(x_cent, W_enc, precision=hi) + b_enc)
    log_var = jnp.zeros_like(mu)
    z = mu + eps * jnp.exp(0.5 * log_var)
    x_recon = jnp.dot(z, W_dec, precision=hi) + b_dec
    l2 = jnp.mean(jnp.sum((x_recon - x) ** 2, axis=-1))
    mu_avg = mu.mean(0)
    var_avg = jnp.exp(log_var).mean(0)
    trace_term = jnp.sum(jnp.diagonal(prec) * var_avg)
    quad_term = jnp.dot(jnp.dot(mu_avg, prec, precision=hi), mu_avg, precision=hi)
    log_det_q = jnp.mean(jnp.sum(log_var, axis=1))
    kl = jnp.maximum(0.5 * (trace_term + quad_term - W_enc.shape[1]
                            + logdet - log_det_q), 0.0)
    loss = l2 + kl_coeff * kl
    frac = jnp.mean((jnp.abs(mu) > thresh).astype(jnp.float32), axis=0)
    return loss, l2, kl, mu, z, x_recon, frac


if __name__ == "__main__":
    key = jax.random.PRNGKey(0)
    B, D, H = 32, 16, 128          # batch, d_input, d_hidden (= d_input * dict_mult 8)
    kl_coeff, thresh, corr_rate = 3e-4, 1e-8, 0.5

    k1, k2, k3, k4, k5, k6 = jax.random.split(key, 6)
    # Kaiming-uniform-style init (deterministic, in-script).
    bound_enc = (6.0 / H) ** 0.5
    bound_dec = (6.0 / D) ** 0.5
    W_enc = jax.random.uniform(k1, (D, H), jnp.float32, -bound_enc, bound_enc)
    W_dec = jax.random.uniform(k2, (H, D), jnp.float32, -bound_dec, bound_dec)
    W_dec = W_dec / jnp.clip(jnp.linalg.norm(W_dec, axis=-1, keepdims=True), 1e-6)
    # Small nonzero biases so the b_dec-into-b_enc fold is actually exercised.
    b_enc = 0.05 * jax.random.normal(k5, (H,), jnp.float32)
    b_dec = 0.10 * jax.random.normal(k6, (D,), jnp.float32)

    # Prior covariance: constant correlation corr_rate off-diagonal, 1 on diagonal.
    prior_cov = jnp.full((H, H), corr_rate, jnp.float32)
    prior_cov = prior_cov.at[jnp.arange(H), jnp.arange(H)].set(1.0)

    x = jax.random.normal(k3, (B, D), jnp.float32)
    eps = jax.random.normal(k4, (B, H), jnp.float32)   # reparameterization noise

    # tile_b=16 just to exercise the multi-tile partial-sum path on the tiny
    # demo batch; production default is 256 (auto-clamped to VMEM / B).
    out = vsae_forward(x, eps, W_enc, b_enc, b_dec, W_dec, prior_cov,
                       kl_coeff=kl_coeff, thresh=thresh, tile_b=16)
    jax.block_until_ready(out)

    # Sanity check against a plain-JAX f32 reference of the same math.
    ref_loss, ref_l2, ref_kl, ref_mu, ref_z, ref_xr, ref_frac = _reference(
        x, eps, W_enc, b_enc, b_dec, W_dec, prior_cov, kl_coeff, thresh)
    np.testing.assert_allclose(out["mu"], ref_mu, rtol=2e-2, atol=2e-2)
    np.testing.assert_allclose(out["z"], ref_z, rtol=2e-2, atol=3e-2)
    np.testing.assert_allclose(out["x_recon"], ref_xr, rtol=2e-2, atol=5e-2)
    np.testing.assert_allclose(out["l2_loss"], ref_l2, rtol=2e-2, atol=2e-2)
    np.testing.assert_allclose(out["kl_loss"], ref_kl, rtol=2e-2, atol=2e-2)
    np.testing.assert_allclose(out["loss"], ref_loss, rtol=2e-2, atol=2e-2)
    # frac_active: bf16 matmul rounding can flip ReLU-boundary activations vs
    # the f32 reference (each flip shifts frac by 1/B), so verify consistency
    # against the kernel's own mu (closeness of mu to the reference is above).
    frac_self = (np.abs(np.asarray(out["mu"])) > thresh).astype(np.float32).mean(0)
    np.testing.assert_allclose(out["frac_active"], frac_self, rtol=1e-6, atol=1e-6)

    print("KERNEL_OK")
</pallas_src>

<mosaic_0001>
module attributes {stable_mosaic.version = 11 : i64} {
  func.func @_vsae_kernel(%arg0: i32, %arg1: memref<16x128xbf16, #tpu.memory_space<vmem>>, %arg2: memref<16x128xbf16, #tpu.memory_space<vmem>>, %arg3: memref<128x128xbf16, #tpu.memory_space<vmem>>, %arg4: memref<1x128xf32, #tpu.memory_space<vmem>>, %arg5: memref<1x128xf32, #tpu.memory_space<vmem>>, %arg6: memref<128x128xbf16, #tpu.memory_space<vmem>>, %arg7: memref<16x128xf32, #tpu.memory_space<vmem>>, %arg8: memref<16x128xf32, #tpu.memory_space<vmem>>, %arg9: memref<1x3x128xf32, #tpu.memory_space<vmem>>) attributes {dimension_semantics = [#tpu.dimension_semantics<parallel>], iteration_bounds = array<i64: 2>, scalar_prefetch = 0 : i64, scratch_operands = 0 : i64, tpu.core_type = #tpu.core_type<tc>, window_params = [{transform_indices = @transform_0, window_bounds = array<i64: 16, 128>}, {transform_indices = @transform_1, window_bounds = array<i64: 16, 128>}, {pipeline_mode = #tpu.pipeline_mode<synchronous>, transform_indices = @transform_2, window_bounds = array<i64: 128, 128>}, {pipeline_mode = #tpu.pipeline_mode<synchronous>, transform_indices = @transform_3, window_bounds = array<i64: 1, 128>}, {pipeline_mode = #tpu.pipeline_mode<synchronous>, transform_indices = @transform_4, window_bounds = array<i64: 1, 128>}, {pipeline_mode = #tpu.pipeline_mode<synchronous>, transform_indices = @transform_5, window_bounds = array<i64: 128, 128>}, {transform_indices = @transform_6, window_bounds = array<i64: 16, 128>}, {transform_indices = @transform_7, window_bounds = array<i64: 16, 128>}, {transform_indices = @transform_8, window_bounds = array<i64: 1, 3, 128>}]} {
    %c0 = arith.constant 0 : index
    %c0_0 = arith.constant 0 : index
    %0 = vector.load %arg1[%c0, %c0_0] : memref<16x128xbf16, #tpu.memory_space<vmem>>, vector<16x128xbf16>
    %c0_1 = arith.constant 0 : index
    %c0_2 = arith.constant 0 : index
    %1 = vector.load %arg3[%c0_1, %c0_2] : memref<128x128xbf16, #tpu.memory_space<vmem>>, vector<128x128xbf16>
    %cst = arith.constant dense<0.000000e+00> : vector<16x128xf32>
    %2 = tpu.matmul %0, %1, %cst {dimension_numbers = #tpu.dot_dimension_numbers<[1], [0], [0], [1], [0, 0, 1, 1], [], []>} : vector<16x128xbf16>, vector<128x128xbf16>, vector<16x128xf32> -> vector<16x128xf32>
    %c0_3 = arith.constant 0 : index
    %c0_4 = arith.constant 0 : index
    %3 = vector.load %arg4[%c0_3, %c0_4] : memref<1x128xf32, #tpu.memory_space<vmem>>, vector<1x128xf32>
    %4 = vector.broadcast %3 : vector<1x128xf32> to vector<16x128xf32>
    %5 = arith.addf %2, %4 : vector<16x128xf32>
    %cst_5 = arith.constant 0.000000e+00 : f32
    %6 = vector.broadcast %cst_5 : f32 to vector<16x128xf32>
    %7 = arith.maximumf %5, %6 : vector<16x128xf32>
    %c0_6 = arith.constant 0 : index
    %c0_7 = arith.constant 0 : index
    %8 = vector.load %arg2[%c0_6, %c0_7] : memref<16x128xbf16, #tpu.memory_space<vmem>>, vector<16x128xbf16>
    %9 = arith.extf %8 : vector<16x128xbf16> to vector<16x128xf32>
    %10 = arith.addf %7, %9 : vector<16x128xf32>
    %11 = arith.truncf %10 : vector<16x128xf32> to vector<16x128xbf16>
    %c0_8 = arith.constant 0 : index
    %c0_9 = arith.constant 0 : index
    %12 = vector.load %arg6[%c0_8, %c0_9] : memref<128x128xbf16, #tpu.memory_space<vmem>>, vector<128x128xbf16>
    %cst_10 = arith.constant dense<0.000000e+00> : vector<16x128xf32>
    %13 = tpu.matmul %11, %12, %cst_10 {dimension_numbers = #tpu.dot_dimension_numbers<[1], [0], [0], [1], [0, 0, 1, 1], [], []>} : vector<16x128xbf16>, vector<128x128xbf16>, vector<16x128xf32> -> vector<16x128xf32>
    %c0_11 = arith.constant 0 : index
    %c0_12 = arith.constant 0 : index
    %14 = vector.load %arg5[%c0_11, %c0_12] : memref<1x128xf32, #tpu.memory_space<vmem>>, vector<1x128xf32>
    %15 = vector.broadcast %14 : vector<1x128xf32> to vector<16x128xf32>
    %16 = arith.addf %13, %15 : vector<16x128xf32>
    %c0_13 = arith.constant 0 : index
    %c0_14 = arith.constant 0 : index
    %17 = vector.load %arg7[%c0_13, %c0_14] : memref<16x128xf32, #tpu.memory_space<vmem>>, vector<16x128xf32>
    tpu.vector_store %arg7[%c0_13, %c0_14], %7 {strides = array<i32>} : memref<16x128xf32, #tpu.memory_space<vmem>>, vector<16x128xf32>,
    %c0_15 = arith.constant 0 : index
    %c0_16 = arith.constant 0 : index
    %18 = vector.load %arg8[%c0_15, %c0_16] : memref<16x128xf32, #tpu.memory_space<vmem>>, vector<16x128xf32>
    tpu.vector_store %arg8[%c0_15, %c0_16], %16 {strides = array<i32>} : memref<16x128xf32, #tpu.memory_space<vmem>>, vector<16x128xf32>,
    %19 = arith.extf %0 : vector<16x128xbf16> to vector<16x128xf32>
    %20 = arith.subf %16, %19 : vector<16x128xf32>
    %cst_17 = arith.constant dense<0.000000e+00> : vector<128xf32>
    %21 = vector.multi_reduction <add>, %7, %cst_17 [0] : vector<16x128xf32> to vector<128xf32>
    %22 = vector.shape_cast %21 : vector<128xf32> to vector<1x128xf32>
    %cst_18 = arith.constant 9.99999993E-9 : f32
    %23 = vector.broadcast %cst_18 : f32 to vector<16x128xf32>
    %24 = arith.cmpf ogt, %7, %23 : vector<16x128xf32>
    %25 = arith.extui %24 : vector<16x128xi1> to vector<16x128xi32>
    %26 = arith.sitofp %25 : vector<16x128xi32> to vector<16x128xf32>
    %cst_19 = arith.constant dense<0.000000e+00> : vector<128xf32>
    %27 = vector.multi_reduction <add>, %26, %cst_19 [0] : vector<16x128xf32> to vector<128xf32>
    %28 = vector.shape_cast %27 : vector<128xf32> to vector<1x128xf32>
    %29 = arith.mulf %20, %20 : vector<16x128xf32>
    %cst_20 = arith.constant dense<0.000000e+00> : vector<16xf32>
    %30 = vector.multi_reduction <add>, %29, %cst_20 [1] : vector<16x128xf32> to vector<16xf32>
    %31 = vector.shape_cast %30 : vector<16xf32> to vector<16x1xf32>
    %cst_21 = arith.constant dense<0.000000e+00> : vector<1xf32>
    %32 = vector.multi_reduction <add>, %31, %cst_21 [0] : vector<16x1xf32> to vector<1xf32>
    %33 = vector.shape_cast %32 : vector<1xf32> to vector<1x1xf32>
    %cst_22 = arith.constant 0.000000e+00 : f32
    %34 = vector.broadcast %cst_22 : f32 to vector<1x128xf32>
    %35 = vector.broadcast %33 : vector<1x1xf32> to vector<1x128xf32>
    %36 = arith.addf %34, %35 : vector<1x128xf32>
    %37 = tpu.concatenate %22, %28, %36 in 0 : vector<1x128xf32>, vector<1x128xf32>, vector<1x128xf32> -> vector<3x128xf32>
    %38 = vector.shape_cast %37 : vector<3x128xf32> to vector<1x3x128xf32>
    %c0_23 = arith.constant 0 : index
    %c0_24 = arith.constant 0 : index
    %c0_25 = arith.constant 0 : index
    %39 = vector.load %arg9[%c0_23, %c0_24, %c0_25] : memref<1x3x128xf32, #tpu.memory_space<vmem>>, vector<1x3x128xf32>
    tpu.vector_store %arg9[%c0_23, %c0_24, %c0_25], %38 {strides = array<i32>} : memref<1x3x128xf32, #tpu.memory_space<vmem>>, vector<1x3x128xf32>,
    return
  }
  func.func @transform_0(%arg0: i32) -> (i32, i32) {
    %c0_i32 = arith.constant 0 : i32
    %c0_i32_0 = arith.constant 0 : i32
    return %arg0, %c0_i32 : i32, i32
  }
  func.func @transform_1(%arg0: i32) -> (i32, i32) {
    %c0_i32 = arith.constant 0 : i32
    %c0_i32_0 = arith.constant 0 : i32
    return %arg0, %c0_i32 : i32, i32
  }
  func.func @transform_2(%arg0: i32) -> (i32, i32) {
    %c0_i32 = arith.constant 0 : i32
    %c0_i32_0 = arith.constant 0 : i32
    %c0_i32_1 = arith.constant 0 : i32
    return %c0_i32, %c0_i32_0 : i32, i32
  }
  func.func @transform_3(%arg0: i32) -> (i32, i32) {
    %c0_i32 = arith.constant 0 : i32
    %c0_i32_0 = arith.constant 0 : i32
    %c0_i32_1 = arith.constant 0 : i32
    return %c0_i32, %c0_i32_0 : i32, i32
  }
  func.func @transform_4(%arg0: i32) -> (i32, i32) {
    %c0_i32 = arith.constant 0 : i32
    %c0_i32_0 = arith.constant 0 : i32
    %c0_i32_1 = arith.constant 0 : i32
    return %c0_i32, %c0_i32_0 : i32, i32
  }
  func.func @transform_5(%arg0: i32) -> (i32, i32) {
    %c0_i32 = arith.constant 0 : i32
    %c0_i32_0 = arith.constant 0 : i32
    %c0_i32_1 = arith.constant 0 : i32
    return %c0_i32, %c0_i32_0 : i32, i32
  }
  func.func @transform_6(%arg0: i32) -> (i32, i32) {
    %c0_i32 = arith.constant 0 : i32
    %c0_i32_0 = arith.constant 0 : i32
    return %arg0, %c0_i32 : i32, i32
  }
  func.func @transform_7(%arg0: i32) -> (i32, i32) {
    %c0_i32 = arith.constant 0 : i32
    %c0_i32_0 = arith.constant 0 : i32
    return %arg0, %c0_i32 : i32, i32
  }
  func.func @transform_8(%arg0: i32) -> (i32, i32, i32) {
    %c0_i32 = arith.constant 0 : i32
    %c0_i32_0 = arith.constant 0 : i32
    %c0_i32_1 = arith.constant 0 : i32
    return %arg0, %c0_i32, %c0_i32_0 : i32, i32, i32
  }
}

module attributes {stable_mosaic.version = 11 : i64} {
  func.func @_vsae_kernel(%arg0: i32, %arg1: memref<16x128xbf16, #tpu.memory_space<vmem>>, %arg2: memref<16x128xbf16, #tpu.memory_space<vmem>>, %arg3: memref<128x128xbf16, #tpu.memory_space<vmem>>, %arg4: memref<1x128xf32, #tpu.memory_space<vmem>>, %arg5: memref<1x128xf32, #tpu.memory_space<vmem>>, %arg6: memref<128x128xbf16, #tpu.memory_space<vmem>>, %arg7: memref<16x128xf32, #tpu.memory_space<vmem>>, %arg8: memref<16x128xf32, #tpu.memory_space<vmem>>, %arg9: memref<1x3x128xf32, #tpu.memory_space<vmem>>) attributes {dimension_semantics = [#tpu.dimension_semantics<parallel>], iteration_bounds = array<i64: 2>, scalar_prefetch = 0 : i64, scratch_operands = 0 : i64, tpu.core_type = #tpu.core_type<tc>, window_params = [{transform_indices = @transform_0, window_bounds = array<i64: 16, 128>}, {transform_indices = @transform_1, window_bounds = array<i64: 16, 128>}, {pipeline_mode = #tpu.pipeline_mode<synchronous>, transform_indices = @transform_2, window_bounds = array<i64: 128, 128>}, {pipeline_mode = #tpu.pipeline_mode<synchronous>, transform_indices = @transform_3, window_bounds = array<i64: 1, 128>}, {pipeline_mode = #tpu.pipeline_mode<synchronous>, transform_indices = @transform_4, window_bounds = array<i64: 1, 128>}, {pipeline_mode = #tpu.pipeline_mode<synchronous>, transform_indices = @transform_5, window_bounds = array<i64: 128, 128>}, {transform_indices = @transform_6, window_bounds = array<i64: 16, 128>}, {transform_indices = @transform_7, window_bounds = array<i64: 16, 128>}, {transform_indices = @transform_8, window_bounds = array<i64: 1, 3, 128>}]} {
    %c0 = arith.constant 0 : index
    %c0_0 = arith.constant 0 : index
    %0 = vector.load %arg1[%c0, %c0_0] : memref<16x128xbf16, #tpu.memory_space<vmem>>, vector<16x128xbf16>
    %c0_1 = arith.constant 0 : index
    %c0_2 = arith.constant 0 : index
    %1 = vector.load %arg3[%c0_1, %c0_2] : memref<128x128xbf16, #tpu.memory_space<vmem>>, vector<128x128xbf16>
    %cst = arith.constant dense<0.000000e+00> : vector<16x128xf32>
    %2 = tpu.matmul %0, %1, %cst {dimension_numbers = #tpu.dot_dimension_numbers<[1], [0], [0], [1], [0, 0, 1, 1], [], []>} : vector<16x128xbf16>, vector<128x128xbf16>, vector<16x128xf32> -> vector<16x128xf32>
    %c0_3 = arith.constant 0 : index
    %c0_4 = arith.constant 0 : index
    %3 = vector.load %arg4[%c0_3, %c0_4] : memref<1x128xf32, #tpu.memory_space<vmem>>, vector<1x128xf32>
    %4 = vector.broadcast %3 : vector<1x128xf32> to vector<16x128xf32>
    %5 = arith.addf %2, %4 : vector<16x128xf32>
    %cst_5 = arith.constant 0.000000e+00 : f32
    %6 = vector.broadcast %cst_5 : f32 to vector<16x128xf32>
    %7 = arith.maximumf %5, %6 : vector<16x128xf32>
    %c0_6 = arith.constant 0 : index
    %c0_7 = arith.constant 0 : index
    %8 = vector.load %arg2[%c0_6, %c0_7] : memref<16x128xbf16, #tpu.memory_space<vmem>>, vector<16x128xbf16>
    %9 = arith.extf %8 : vector<16x128xbf16> to vector<16x128xf32>
    %10 = arith.addf %7, %9 : vector<16x128xf32>
    %11 = arith.truncf %10 : vector<16x128xf32> to vector<16x128xbf16>
    %c0_8 = arith.constant 0 : index
    %c0_9 = arith.constant 0 : index
    %12 = vector.load %arg6[%c0_8, %c0_9] : memref<128x128xbf16, #tpu.memory_space<vmem>>, vector<128x128xbf16>
    %cst_10 = arith.constant dense<0.000000e+00> : vector<16x128xf32>
    %13 = tpu.matmul %11, %12, %cst_10 {dimension_numbers = #tpu.dot_dimension_numbers<[1], [0], [0], [1], [0, 0, 1, 1], [], []>} : vector<16x128xbf16>, vector<128x128xbf16>, vector<16x128xf32> -> vector<16x128xf32>
    %c0_11 = arith.constant 0 : index
    %c0_12 = arith.constant 0 : index
    %14 = vector.load %arg5[%c0_11, %c0_12] : memref<1x128xf32, #tpu.memory_space<vmem>>, vector<1x128xf32>
    %15 = vector.broadcast %14 : vector<1x128xf32> to vector<16x128xf32>
    %16 = arith.addf %13, %15 : vector<16x128xf32>
    %c0_13 = arith.constant 0 : index
    %c0_14 = arith.constant 0 : index
    %17 = vector.load %arg7[%c0_13, %c0_14] : memref<16x128xf32, #tpu.memory_space<vmem>>, vector<16x128xf32>
    tpu.vector_store %arg7[%c0_13, %c0_14], %7 {strides = array<i32>} : memref<16x128xf32, #tpu.memory_space<vmem>>, vector<16x128xf32>,
    %c0_15 = arith.constant 0 : index
    %c0_16 = arith.constant 0 : index
    %18 = vector.load %arg8[%c0_15, %c0_16] : memref<16x128xf32, #tpu.memory_space<vmem>>, vector<16x128xf32>
    tpu.vector_store %arg8[%c0_15, %c0_16], %16 {strides = array<i32>} : memref<16x128xf32, #tpu.memory_space<vmem>>, vector<16x128xf32>,
    %19 = arith.extf %0 : vector<16x128xbf16> to vector<16x128xf32>
    %20 = arith.subf %16, %19 : vector<16x128xf32>
    %cst_17 = arith.constant dense<0.000000e+00> : vector<128xf32>
    %21 = vector.multi_reduction <add>, %7, %cst_17 [0] : vector<16x128xf32> to vector<128xf32>
    %22 = vector.shape_cast %21 : vector<128xf32> to vector<1x128xf32>
    %cst_18 = arith.constant 9.99999993E-9 : f32
    %23 = vector.broadcast %cst_18 : f32 to vector<16x128xf32>
    %24 = arith.cmpf ogt, %7, %23 : vector<16x128xf32>
    %25 = arith.extui %24 : vector<16x128xi1> to vector<16x128xi32>
    %26 = arith.sitofp %25 : vector<16x128xi32> to vector<16x128xf32>
    %cst_19 = arith.constant dense<0.000000e+00> : vector<128xf32>
    %27 = vector.multi_reduction <add>, %26, %cst_19 [0] : vector<16x128xf32> to vector<128xf32>
    %28 = vector.shape_cast %27 : vector<128xf32> to vector<1x128xf32>
    %29 = arith.mulf %20, %20 : vector<16x128xf32>
    %cst_20 = arith.constant dense<0.000000e+00> : vector<16xf32>
    %30 = vector.multi_reduction <add>, %29, %cst_20 [1] : vector<16x128xf32> to vector<16xf32>
    %31 = vector.shape_cast %30 : vector<16xf32> to vector<16x1xf32>
    %cst_21 = arith.constant dense<0.000000e+00> : vector<1xf32>
    %32 = vector.multi_reduction <add>, %31, %cst_21 [0] : vector<16x1xf32> to vector<1xf32>
    %33 = vector.shape_cast %32 : vector<1xf32> to vector<1x1xf32>
    %cst_22 = arith.constant 0.000000e+00 : f32
    %34 = vector.broadcast %cst_22 : f32 to vector<1x128xf32>
    %35 = vector.broadcast %33 : vector<1x1xf32> to vector<1x128xf32>
    %36 = arith.addf %34, %35 : vector<1x128xf32>
    %37 = tpu.concatenate %22, %28, %36 in 0 : vector<1x128xf32>, vector<1x128xf32>, vector<1x128xf32> -> vector<3x128xf32>
    %38 = vector.shape_cast %37 : vector<3x128xf32> to vector<1x3x128xf32>
    %c0_23 = arith.constant 0 : index
    %c0_24 = arith.constant 0 : index
    %c0_25 = arith.constant 0 : index
    %39 = vector.load %arg9[%c0_23, %c0_24, %c0_25] : memref<1x3x128xf32, #tpu.memory_space<vmem>>, vector<1x3x128xf32>
    tpu.vector_store %arg9[%c0_23, %c0_24, %c0_25], %38 {strides = array<i32>} : memref<1x3x128xf32, #tpu.memory_space<vmem>>, vector<1x3x128xf32>,
    return
  }
  func.func @transform_0(%arg0: i32) -> (i32, i32) {
    %c0_i32 = arith.constant 0 : i32
    %c0_i32_0 = arith.constant 0 : i32
    return %arg0, %c0_i32 : i32, i32
  }
  func.func @transform_1(%arg0: i32) -> (i32, i32) {
    %c0_i32 = arith.constant 0 : i32
    %c0_i32_0 = arith.constant 0 : i32
    return %arg0, %c0_i32 : i32, i32
  }
  func.func @transform_2(%arg0: i32) -> (i32, i32) {
    %c0_i32 = arith.constant 0 : i32
    %c0_i32_0 = arith.constant 0 : i32
    %c0_i32_1 = arith.constant 0 : i32
    return %c0_i32, %c0_i32_0 : i32, i32
  }
  func.func @transform_3(%arg0: i32) -> (i32, i32) {
    %c0_i32 = arith.constant 0 : i32
    %c0_i32_0 = arith.constant 0 : i32
    %c0_i32_1 = arith.constant 0 : i32
    return %c0_i32, %c0_i32_0 : i32, i32
  }
  func.func @transform_4(%arg0: i32) -> (i32, i32) {
    %c0_i32 = arith.constant 0 : i32
    %c0_i32_0 = arith.constant 0 : i32
    %c0_i32_1 = arith.constant 0 : i32
    return %c0_i32, %c0_i32_0 : i32, i32
  }
  func.func @transform_5(%arg0: i32) -> (i32, i32) {
    %c0_i32 = arith.constant 0 : i32
    %c0_i32_0 = arith.constant 0 : i32
    %c0_i32_1 = arith.constant 0 : i32
    return %c0_i32, %c0_i32_0 : i32, i32
  }
  func.func @transform_6(%arg0: i32) -> (i32, i32) {
    %c0_i32 = arith.constant 0 : i32
    %c0_i32_0 = arith.constant 0 : i32
    return %arg0, %c0_i32 : i32, i32
  }
  func.func @transform_7(%arg0: i32) -> (i32, i32) {
    %c0_i32 = arith.constant 0 : i32
    %c0_i32_0 = arith.constant 0 : i32
    return %arg0, %c0_i32 : i32, i32
  }
  func.func @transform_8(%arg0: i32) -> (i32, i32, i32) {
    %c0_i32 = arith.constant 0 : i32
    %c0_i32_0 = arith.constant 0 : i32
    %c0_i32_1 = arith.constant 0 : i32
    return %arg0, %c0_i32, %c0_i32_0 : i32, i32, i32
  }
}

</mosaic_0001>

<llo_original>
// kernel: tpu_custom_call.1
$region0: #{tpu_custom_call.1}
  #allocation0 [shape = 'u32[]', space=smem, size = 0x4, offset = 0x4, fixed_abs, tag = 'smem constant byte address 0x4 - core index']
  #allocation1 [shape = 'u32[144,128]{1,0:T(1,128)}', space=vmem, size = 0x12000, scoped, tag = 'internal scratch']
  %s0 = inlined_call_operand.hbm [shape: bf16[32,128], index: 0, kind: input, shape index: {}]
  %s1 = inlined_call_operand.hbm [shape: bf16[32,128], index: 1, kind: input, shape index: {}]
  %s2 = inlined_call_operand.hbm [shape: bf16[128,128], index: 2, kind: input, shape index: {}]
  %s3 = inlined_call_operand.hbm [shape: f32[1,128], index: 3, kind: input, shape index: {}]
  %s4 = inlined_call_operand.hbm [shape: f32[1,128], index: 4, kind: input, shape index: {}]
  %s5 = inlined_call_operand.hbm [shape: bf16[128,128], index: 5, kind: input, shape index: {}]
  %s6 = inlined_call_operand.hbm [shape: f32[32,128], index: 6, kind: output, shape index: {0}]
  %s7 = inlined_call_operand.hbm [shape: f32[32,128], index: 7, kind: output, shape index: {1}]
  %s8 = inlined_call_operand.hbm [shape: f32[2,3,128], index: 8, kind: output, shape index: {2}]
  %9 = xla_tuple %s6, %s7, %s8
  %s10 = sld [smem:[#allocation0]]
  $region97: #{tpu_custom_call.1} parent=0
    _
  %s12 = ssub.s32 1, %s10
  %s13 = scalar_select 0, %s12, %s10
  $region1: #{tpu_custom_call.1} parent=0
    #allocation2 [shape = 'u8[8192]{0}', space=vmem, size = 0x2000, scoped, tag = 'input window, operand 0']
    #allocation3 [shape = 's32[2]{0}', space=sflag, size = 0x8, scoped, tag = 'scoped memory for tpu_custom_call.1']
    #allocation4 [shape = 's32[2]{0}', space=sflag, size = 0x8, scoped, tag = 'scoped memory for tpu_custom_call.1']
    #allocation5 [shape = 'u8[8192]{0}', space=vmem, size = 0x2000, scoped, tag = 'input window, operand 1']
    #allocation6 [shape = 's32[2]{0}', space=sflag, size = 0x8, scoped, tag = 'scoped memory for tpu_custom_call.1']
    #allocation7 [shape = 'u8[32768]{0}', space=vmem, size = 0x8000, scoped, tag = 'input window, operand 2, single buffered']
    #allocation8 [shape = 'u8[512]{0}', space=vmem, size = 0x400, scoped, tag = 'input window, operand 3, single buffered']
    #allocation9 [shape = 's32[1]{0}', space=sflag, size = 0x4, scoped, tag = 'scoped memory for tpu_custom_call.1']
    #allocation10 [shape = 'u8[512]{0}', space=vmem, size = 0x400, scoped, tag = 'input window, operand 4, single buffered']
    #allocation11 [shape = 'u8[32768]{0}', space=vmem, size = 0x8000, scoped, tag = 'input window, operand 5, single buffered']
    #allocation12 [shape = 's32[1]{0}', space=sflag, size = 0x4, scoped, tag = 'scoped memory for tpu_custom_call.1']
    #allocation13 [shape = 'u8[16384]{0}', space=vmem, size = 0x4000, scoped, tag = 'output window, operand 0']
    #allocation14 [shape = 'u8[16384]{0}', space=vmem, size = 0x4000, scoped, tag = 'output window, operand 1']
    #allocation15 [shape = 's32[2]{0}', space=sflag, size = 0x8, scoped, tag = 'scoped memory for tpu_custom_call.1']
    #allocation16 [shape = 'u8[4096]{0}', space=vmem, size = 0x1000, scoped, tag = 'output window, operand 2']
    %14 = vsyncpa [#allocation3], 0
    %s15 = scalar_lea.sflag [#allocation3], 1
    %16 = vsyncpa %s15, 0
    %17 = vsyncpa [#allocation6], 0
    %s18 = scalar_lea.sflag [#allocation6], 1
    %19 = vsyncpa %s18, 0
    %20 = vsyncpa [#allocation9], 0
    %21 = vsyncpa [#allocation12], 0
    %22 = vsyncpa [#allocation4], 0
    %s23 = scalar_lea.sflag [#allocation4], 1
    %24 = vsyncpa %s23, 0
    %25 = vsyncpa [#allocation15], 0
    %s26 = scalar_lea.sflag [#allocation15], 1
    %27 = vsyncpa %s26, 0
    loop: start=0, step=1, limit=4
    $region2: #{tpu_custom_call.1} parent=1 // loop_pre_header
      _
    $region3: #{tpu_custom_call.1} parent=1 // loop_header
      %s29 = sphi 0, %s33
      %p30 = scmp.ge.s32.totalorder %s29, 4
      %s39 = sphi 0, %s41
      %s42 = sphi 0, %s39
      %s43 = sphi 0, %s42
      %s59 = sphi 0, %s43
      %s65 = sphi 0, %s67
      %s68 = sphi 0, %s65
      %s69 = sphi 0, %s68
      %s85 = sphi 0, %s69
      %s89 = sphi 0, %s89
      %s91 = sphi 0, %s89
      %s92 = sphi 0, %s91
      %s106 = sphi 0, %s92
      %s110 = sphi 0, %s110
      %s112 = sphi 0, %s110
      %s113 = sphi 0, %s112
      %s127 = sphi 0, %s113
      %s131 = sphi 0, %s131
      %s133 = sphi 0, %s131
      %s134 = sphi 0, %s133
      %s148 = sphi 0, %s134
      %s152 = sphi 0, %s152
      %s154 = sphi 0, %s152
      %s155 = sphi 0, %s154
      %s169 = sphi 0, %s155
      %s175 = sphi 0, %s177
      %s178 = sphi 0, %s175
      %s179 = sphi 0, %s178
      %s195 = sphi 0, %s179
      %s201 = sphi 0, %s203
      %s204 = sphi 0, %s201
      %s205 = sphi 0, %s204
      %s221 = sphi 0, %s205
      %s227 = sphi 0, %s229
      %s230 = sphi 0, %s227
      %s231 = sphi 0, %s230
      %s247 = sphi 0, %s231
    $region4: #{tpu_custom_call.1} parent=1 // loop_header_branch
      %32 = sbr.rel (%p30) target = $region8
    $region5: #{tpu_custom_call.1} parent=1 // loop_body
      %s34 = ssub.s32 %s29, 1
      %s35 = ssub.s32 %s29, 2
      %s36 = sadd.s32 %s29, 1
      %s37 = ssub.s32 %s29, %s36
      %p38 = scmp.eq.s32.totalorder %s37, 0
      %s40 = sadd.s32 %s39, 1
      %s41 = scalar_select %p38, %s39, %s40
      %p44 = pneg %p38
      %p45 = scmp.eq.s32.totalorder %s29, 1
      %p46 = por %p44, %p45
      %p47 = scmp.ne.s32.totalorder %s39, %s42
      %p48 = scmp.eq.s32.totalorder %s29, 0
      %p49 = por %p47, %p48
      %p50 = scmp.ne.s32.totalorder %s39, %s42
      %p51 = scmp.eq.s32.totalorder %s34, 1
      %p52 = por %p50, %p51
      %p53 = scmp.ne.s32.totalorder %s42, %s43
      %p54 = scmp.eq.s32.totalorder %s34, 0
      %p55 = por %p53, %p54
      %p56 = scmp.ne.s32.totalorder %s42, %s43
      %p57 = scmp.eq.s32.totalorder %s35, 1
      %p58 = por %p56, %p57
      %p60 = scmp.ne.s32.totalorder %s43, %s59
      %p61 = scmp.eq.s32.totalorder %s35, 0
      %p62 = por %p60, %p61
      %s63 = ssub.s32 %s29, %s36
      %p64 = scmp.eq.s32.totalorder %s63, 0
      %s66 = sadd.s32 %s65, 1
      %s67 = scalar_select %p64, %s65, %s66
      %p70 = pneg %p64
      %p71 = scmp.eq.s32.totalorder %s29, 1
      %p72 = por %p70, %p71
      %p73 = scmp.ne.s32.totalorder %s65, %s68
      %p74 = scmp.eq.s32.totalorder %s29, 0
      %p75 = por %p73, %p74
      %p76 = scmp.ne.s32.totalorder %s65, %s68
      %p77 = scmp.eq.s32.totalorder %s34, 1
      %p78 = por %p76, %p77
      %p79 = scmp.ne.s32.totalorder %s68, %s69
      %p80 = scmp.eq.s32.totalorder %s34, 0
      %p81 = por %p79, %p80
      %p82 = scmp.ne.s32.totalorder %s68, %s69
      %p83 = scmp.eq.s32.totalorder %s35, 1
      %p84 = por %p82, %p83
      %p86 = scmp.ne.s32.totalorder %s69, %s85
      %p87 = scmp.eq.s32.totalorder %s35, 0
      %p88 = por %p86, %p87
      %s90 = sadd.s32 %s89, 1
      %p93 = scmp.eq.s32.totalorder %s29, 1
      %p94 = scmp.ne.s32.totalorder %s89, %s91
      %p95 = scmp.eq.s32.totalorder %s29, 0
      %p96 = por %p94, %p95
      %p97 = scmp.ne.s32.totalorder %s89, %s91
      %p98 = scmp.eq.s32.totalorder %s34, 1
      %p99 = por %p97, %p98
      %p100 = scmp.ne.s32.totalorder %s91, %s92
      %p101 = scmp.eq.s32.totalorder %s34, 0
      %p102 = por %p100, %p101
      %p103 = scmp.ne.s32.totalorder %s91, %s92
      %p104 = scmp.eq.s32.totalorder %s35, 1
      %p105 = por %p103, %p104
      %p107 = scmp.ne.s32.totalorder %s92, %s106
      %p108 = scmp.eq.s32.totalorder %s35, 0
      %p109 = por %p107, %p108
      %s111 = sadd.s32 %s110, 1
      %p114 = scmp.eq.s32.totalorder %s29, 1
      %p115 = scmp.ne.s32.totalorder %s110, %s112
      %p116 = scmp.eq.s32.totalorder %s29, 0
      %p117 = por %p115, %p116
      %p118 = scmp.ne.s32.totalorder %s110, %s112
      %p119 = scmp.eq.s32.totalorder %s34, 1
      %p120 = por %p118, %p119
      %p121 = scmp.ne.s32.totalorder %s112, %s113
      %p122 = scmp.eq.s32.totalorder %s34, 0
      %p123 = por %p121, %p122
      %p124 = scmp.ne.s32.totalorder %s112, %s113
      %p125 = scmp.eq.s32.totalorder %s35, 1
      %p126 = por %p124, %p125
      %p128 = scmp.ne.s32.totalorder %s113, %s127
      %p129 = scmp.eq.s32.totalorder %s35, 0
      %p130 = por %p128, %p129
      %s132 = sadd.s32 %s131, 1
      %p135 = scmp.eq.s32.totalorder %s29, 1
      %p136 = scmp.ne.s32.totalorder %s131, %s133
      %p137 = scmp.eq.s32.totalorder %s29, 0
      %p138 = por %p136, %p137
      %p139 = scmp.ne.s32.totalorder %s131, %s133
      %p140 = scmp.eq.s32.totalorder %s34, 1
      %p141 = por %p139, %p140
      %p142 = scmp.ne.s32.totalorder %s133, %s134
      %p143 = scmp.eq.s32.totalorder %s34, 0
      %p144 = por %p142, %p143
      %p145 = scmp.ne.s32.totalorder %s133, %s134
      %p146 = scmp.eq.s32.totalorder %s35, 1
      %p147 = por %p145, %p146
      %p149 = scmp.ne.s32.totalorder %s134, %s148
      %p150 = scmp.eq.s32.totalorder %s35, 0
      %p151 = por %p149, %p150
      %s153 = sadd.s32 %s152, 1
      %p156 = scmp.eq.s32.totalorder %s29, 1
      %p157 = scmp.ne.s32.totalorder %s152, %s154
      %p158 = scmp.eq.s32.totalorder %s29, 0
      %p159 = por %p157, %p158
      %p160 = scmp.ne.s32.totalorder %s152, %s154
      %p161 = scmp.eq.s32.totalorder %s34, 1
      %p162 = por %p160, %p161
      %p163 = scmp.ne.s32.totalorder %s154, %s155
      %p164 = scmp.eq.s32.totalorder %s34, 0
      %p165 = por %p163, %p164
      %p166 = scmp.ne.s32.totalorder %s154, %s155
      %p167 = scmp.eq.s32.totalorder %s35, 1
      %p168 = por %p166, %p167
      %p170 = scmp.ne.s32.totalorder %s155, %s169
      %p171 = scmp.eq.s32.totalorder %s35, 0
      %p172 = por %p170, %p171
      %s173 = ssub.s32 %s29, %s36
      %p174 = scmp.eq.s32.totalorder %s173, 0
      %s176 = sadd.s32 %s175, 1
      %s177 = scalar_select %p174, %s175, %s176
      %p180 = pneg %p174
      %p181 = scmp.eq.s32.totalorder %s29, 1
      %p182 = por %p180, %p181
      %p183 = scmp.ne.s32.totalorder %s175, %s178
      %p184 = scmp.eq.s32.totalorder %s29, 0
      %p185 = por %p183, %p184
      %p186 = scmp.ne.s32.totalorder %s175, %s178
      %p187 = scmp.eq.s32.totalorder %s34, 1
      %p188 = por %p186, %p187
      %p189 = scmp.ne.s32.totalorder %s178, %s179
      %p190 = scmp.eq.s32.totalorder %s34, 0
      %p191 = por %p189, %p190
      %p192 = scmp.ne.s32.totalorder %s178, %s179
      %p193 = scmp.eq.s32.totalorder %s35, 1
      %p194 = por %p192, %p193
      %p196 = scmp.ne.s32.totalorder %s179, %s195
      %p197 = scmp.eq.s32.totalorder %s35, 0
      %p198 = por %p196, %p197
      %s199 = ssub.s32 %s29, %s36
      %p200 = scmp.eq.s32.totalorder %s199, 0
      %s202 = sadd.s32 %s201, 1
      %s203 = scalar_select %p200, %s201, %s202
      %p206 = pneg %p200
      %p207 = scmp.eq.s32.totalorder %s29, 1
      %p208 = por %p206, %p207
      %p209 = scmp.ne.s32.totalorder %s201, %s204
      %p210 = scmp.eq.s32.totalorder %s29, 0
      %p211 = por %p209, %p210
      %p212 = scmp.ne.s32.totalorder %s201, %s204
      %p213 = scmp.eq.s32.totalorder %s34, 1
      %p214 = por %p212, %p213
      %p215 = scmp.ne.s32.totalorder %s204, %s205
      %p216 = scmp.eq.s32.totalorder %s34, 0
      %p217 = por %p215, %p216
      %p218 = scmp.ne.s32.totalorder %s204, %s205
      %p219 = scmp.eq.s32.totalorder %s35, 1
      %p220 = por %p218, %p219
      %p222 = scmp.ne.s32.totalorder %s205, %s221
      %p223 = scmp.eq.s32.totalorder %s35, 0
      %p224 = por %p222, %p223
      %s225 = ssub.s32 %s29, %s36
      %p226 = scmp.eq.s32.totalorder %s225, 0
      %s228 = sadd.s32 %s227, 1
      %s229 = scalar_select %p226, %s227, %s228
      %p232 = pneg %p226
      %p233 = scmp.eq.s32.totalorder %s29, 1
      %p234 = por %p232, %p233
      %p235 = scmp.ne.s32.totalorder %s227, %s230
      %p236 = scmp.eq.s32.totalorder %s29, 0
      %p237 = por %p235, %p236
      %p238 = scmp.ne.s32.totalorder %s227, %s230
      %p239 = scmp.eq.s32.totalorder %s34, 1
      %p240 = por %p238, %p239
      %p241 = scmp.ne.s32.totalorder %s230, %s231
      %p242 = scmp.eq.s32.totalorder %s34, 0
      %p243 = por %p241, %p242
      %p244 = scmp.ne.s32.totalorder %s230, %s231
      %p245 = scmp.eq.s32.totalorder %s35, 1
      %p246 = por %p244, %p245
      %p248 = scmp.ne.s32.totalorder %s231, %s247
      %p249 = scmp.eq.s32.totalorder %s35, 0
      %p250 = por %p248, %p249
      %p251 = scmp.le.s32.totalorder 1, %s29
      %p252 = scmp.lt.s32.totalorder %s29, 3
      %p253 = pnand %p251, %p252
      %p254 = pneg %p253
      // Predicated region
      $region9: #{tpu_custom_call.1} parent=5 // pred_check
        _
      $region10: #{tpu_custom_call.1} parent=5 // pred_check_branch
        %256 = sbr.rel (%p253) target = $region12
      $region11: #{tpu_custom_call.1} parent=5 // pred_region
        %s257 = ssub.s32 %s29, 1
        // Predicated region
        $region13: #{tpu_custom_call.1} parent=11 // pred_check
          %p258 = pneg %p102
        $region14: #{tpu_custom_call.1} parent=11 // pred_check_branch
          %260 = sbr.rel (%p258) target = $region16
        $region15: #{tpu_custom_call.1} parent=11 // pred_region
          %s262 = ssub.s32 1024, 1024
          %263 = vsyncadd [#allocation6], %s262
          %s264 = sshll.u32 [#allocation7], 4
          %s265 = int_to_ptr.vmem [resolvable:$true] %s264
          %270 = dma.hbm_to_vmem [thread:$0]  %s2, 1024, %s265, [#allocation6], 64, 64, 4
        $region16: #{tpu_custom_call.1} parent=11 // pred_fallthru
          _
        // Predicated region
        $region17: #{tpu_custom_call.1} parent=11 // pred_check
          %p271 = pneg %p123
        $region18: #{tpu_custom_call.1} parent=11 // pred_check_branch
          %273 = sbr.rel (%p271) target = $region20
        $region19: #{tpu_custom_call.1} parent=11 // pred_region
          %s275 = ssub.s32 16, 16
          %276 = vsyncadd [#allocation9], %s275
          %s278 = sshll.u32 [#allocation8], 4
          %s279 = int_to_ptr.vmem [resolvable:$true] %s278
          %281 = dma.hbm_to_vmem [thread:$0]  %s3, 16, %s279, [#allocation9]
        $region20: #{tpu_custom_call.1} parent=11 // pred_fallthru
          _
        // Predicated region
        $region21: #{tpu_custom_call.1} parent=11 // pred_check
          %p282 = pneg %p144
        $region22: #{tpu_custom_call.1} parent=11 // pred_check_branch
          %284 = sbr.rel (%p282) target = $region24
        $region23: #{tpu_custom_call.1} parent=11 // pred_region
          %s286 = ssub.s32 16, 16
          %287 = vsyncadd [#allocation9], %s286
          %s289 = sshll.u32 [#allocation10], 4
          %s290 = int_to_ptr.vmem [resolvable:$true] %s289
          %292 = dma.hbm_to_vmem [thread:$0]  %s4, 16, %s290, [#allocation9]
        $region24: #{tpu_custom_call.1} parent=11 // pred_fallthru
          _
        // Predicated region
        $region25: #{tpu_custom_call.1} parent=11 // pred_check
          %p293 = pneg %p165
        $region26: #{tpu_custom_call.1} parent=11 // pred_check_branch
          %295 = sbr.rel (%p293) target = $region28
        $region27: #{tpu_custom_call.1} parent=11 // pred_region
          %s297 = ssub.s32 1024, 1024
          %298 = vsyncadd [#allocation12], %s297
          %s299 = sshll.u32 [#allocation11], 4
          %s300 = int_to_ptr.vmem [resolvable:$true] %s299
          %305 = dma.hbm_to_vmem [thread:$0]  %s5, 1024, %s300, [#allocation12], 64, 64, 4
        $region28: #{tpu_custom_call.1} parent=11 // pred_fallthru
          _
      $region12: #{tpu_custom_call.1} parent=5 // pred_fallthru
        _
      %p306 = scmp.lt.s32.totalorder %s29, 2
      // Predicated region
      $region29: #{tpu_custom_call.1} parent=5 // pred_check
        %p307 = pneg %p306
      $region30: #{tpu_custom_call.1} parent=5 // pred_check_branch
        %309 = sbr.rel (%p307) target = $region32
      $region31: #{tpu_custom_call.1} parent=5 // pred_region
        // Predicated region
        $region33: #{tpu_custom_call.1} parent=31 // pred_check
          %p310 = pneg %p49
        $region34: #{tpu_custom_call.1} parent=31 // pred_check_branch
          %312 = sbr.rel (%p310) target = $region36
        $region35: #{tpu_custom_call.1} parent=31 // pred_region
          %s313 = sand.u32 %s39, 1
          %s314 = scalar_lea.sflag [#allocation3], %s313
          %s315 = sand.u32 %s39, 1
          %s316 = smul.addr %s315, 8
          %s317 = scalar_lea.vmem [#allocation2], %s316
          %s318 = smul.u32 2, %s29
          %s320 = ssub.s32 128, 128
          %321 = vsyncadd %s314, %s320
          %s322 = smul.addr %s318, 64
          %s323 = scalar_lea.hbm %s0, %s322
          %s324 = sshll.u32 %s317, 4
          %s325 = int_to_ptr.vmem [resolvable:$true] %s324
          %330 = dma.hbm_to_vmem [thread:$0]  %s323, 128, %s325, %s314, 64, 64, 4
        $region36: #{tpu_custom_call.1} parent=31 // pred_fallthru
          _
        // Predicated region
        $region37: #{tpu_custom_call.1} parent=31 // pred_check
          %p331 = pneg %p75
        $region38: #{tpu_custom_call.1} parent=31 // pred_check_branch
          %333 = sbr.rel (%p331) target = $region40
        $region39: #{tpu_custom_call.1} parent=31 // pred_region
          %s334 = sand.u32 %s29, 1
          %s335 = scalar_lea.sflag [#allocation6], %s334
          %s336 = sand.u32 %s65, 1
          %s337 = smul.addr %s336, 8
          %s338 = scalar_lea.vmem [#allocation5], %s337
          %s339 = smul.u32 2, %s29
          %s341 = ssub.s32 128, 128
          %342 = vsyncadd %s335, %s341
          %s343 = smul.addr %s339, 64
          %s344 = scalar_lea.hbm %s1, %s343
          %s345 = sshll.u32 %s338, 4
          %s346 = int_to_ptr.vmem [resolvable:$true] %s345
          %351 = dma.hbm_to_vmem [thread:$0]  %s344, 128, %s346, %s335, 64, 64, 4
        $region40: #{tpu_custom_call.1} parent=31 // pred_fallthru
          _
      $region32: #{tpu_custom_call.1} parent=5 // pred_fallthru
        _
      %p352 = scmp.le.s32.totalorder 1, %s29
      %p353 = scmp.lt.s32.totalorder %s29, 3
      %p354 = pnand %p352, %p353
      %p355 = pneg %p354
      // Predicated region
      $region41: #{tpu_custom_call.1} parent=5 // pred_check
        _
      $region42: #{tpu_custom_call.1} parent=5 // pred_check_branch
        %357 = sbr.rel (%p354) target = $region44
      $region43: #{tpu_custom_call.1} parent=5 // pred_region
        %s358 = ssub.s32 %s29, 1
        %s359 = sand.u32 %s42, 1
        %s360 = scalar_lea.sflag [#allocation3], %s359
        %s361 = sand.u32 %s42, 1
        %s362 = smul.addr %s361, 8
        %s363 = scalar_lea.vmem [#allocation2], %s362
        // Predicated region
        $region45: #{tpu_custom_call.1} parent=43 // pred_check
          %p364 = pneg %p55
        $region46: #{tpu_custom_call.1} parent=43 // pred_check_branch
          %366 = sbr.rel (%p364) target = $region48
        $region47: #{tpu_custom_call.1} parent=43 // pred_region
          %367 = dma.done %s360, 128
        $region48: #{tpu_custom_call.1} parent=43 // pred_fallthru
          _
        %s368 = sand.u32 %s34, 1
        %s369 = scalar_lea.sflag [#allocation6], %s368
        %s370 = sand.u32 %s68, 1
        %s371 = smul.addr %s370, 8
        %s372 = scalar_lea.vmem [#allocation5], %s371
        // Predicated region
        $region49: #{tpu_custom_call.1} parent=43 // pred_check
          %p373 = pneg %p81
        $region50: #{tpu_custom_call.1} parent=43 // pred_check_branch
          %375 = sbr.rel (%p373) target = $region52
        $region51: #{tpu_custom_call.1} parent=43 // pred_region
          %376 = dma.done %s369, 128
        $region52: #{tpu_custom_call.1} parent=43 // pred_fallthru
          _
        // Predicated region
        $region53: #{tpu_custom_call.1} parent=43 // pred_check
          %p377 = pneg %p102
        $region54: #{tpu_custom_call.1} parent=43 // pred_check_branch
          %379 = sbr.rel (%p377) target = $region56
        $region55: #{tpu_custom_call.1} parent=43 // pred_region
          %380 = dma.done [#allocation6], 1024
        $region56: #{tpu_custom_call.1} parent=43 // pred_fallthru
          _
        // Predicated region
        $region57: #{tpu_custom_call.1} parent=43 // pred_check
          %p381 = pneg %p123
        $region58: #{tpu_custom_call.1} parent=43 // pred_check_branch
          %383 = sbr.rel (%p381) target = $region60
        $region59: #{tpu_custom_call.1} parent=43 // pred_region
          %384 = dma.done [#allocation9], 16
        $region60: #{tpu_custom_call.1} parent=43 // pred_fallthru
          _
        // Predicated region
        $region61: #{tpu_custom_call.1} parent=43 // pred_check
          %p385 = pneg %p144
        $region62: #{tpu_custom_call.1} parent=43 // pred_check_branch
          %387 = sbr.rel (%p385) target = $region64
        $region63: #{tpu_custom_call.1} parent=43 // pred_region
          %388 = dma.done [#allocation9], 16
        $region64: #{tpu_custom_call.1} parent=43 // pred_fallthru
          _
        // Predicated region
        $region65: #{tpu_custom_call.1} parent=43 // pred_check
          %p389 = pneg %p165
        $region66: #{tpu_custom_call.1} parent=43 // pred_check_branch
          %391 = sbr.rel (%p389) target = $region68
        $region67: #{tpu_custom_call.1} parent=43 // pred_region
          %392 = dma.done [#allocation12], 1024
        $region68: #{tpu_custom_call.1} parent=43 // pred_fallthru
          _
        %s393 = sand.u32 %s42, 1
        %s394 = scalar_lea.sflag [#allocation3], %s393
        %s395 = sand.u32 %s42, 1
        %s396 = smul.addr %s395, 8
        %s397 = scalar_lea.vmem [#allocation2], %s396
        %p398 = pneg %p55
        %p399 = pneg %p52
        %s400 = sand.u32 %s34, 1
        %s401 = scalar_lea.sflag [#allocation6], %s400
        %s402 = sand.u32 %s68, 1
        %s403 = smul.addr %s402, 8
        %s404 = scalar_lea.vmem [#allocation5], %s403
        %p405 = pneg %p81
        %p406 = pneg %p78
        %p407 = pneg %p102
        %p408 = pneg %p99
        %p409 = pneg %p123
        %p410 = pneg %p120
        %p411 = pneg %p144
        %p412 = pneg %p141
        %p413 = pneg %p165
        %p414 = pneg %p162
        %p415 = pneg %p191
        %p416 = pneg %p188
        %s417 = sand.u32 %s178, 1
        %s418 = scalar_lea.sflag [#allocation4], %s417
        %s419 = sand.u32 %s178, 1
        %s420 = smul.addr %s419, 16
        %s421 = scalar_lea.vmem [#allocation13], %s420
        %p422 = pneg %p217
        %p423 = pneg %p214
        %s424 = sand.u32 %s34, 1
        %s425 = scalar_lea.sflag [#allocation15], %s424
        %s426 = sand.u32 %s204, 1
        %s427 = smul.addr %s426, 16
        %s428 = scalar_lea.vmem [#allocation14], %s427
        %p429 = pneg %p243
        %p430 = pneg %p240
        %s431 = sand.u32 %s34, 1
        %s432 = scalar_lea.sflag [#allocation15], %s431
        %s433 = sand.u32 %s230, 1
        %s434 = smul.addr %s433, 4
        %s435 = scalar_lea.vmem [#allocation16], %s434
        %s436 = smul.u32 2, %s34
        %s437 = smul.u32 2, %s34
        %s438 = smul.u32 2, %s34
        %s439 = smul.u32 2, %s34
        %v441 = vld [vmem:[%s363] sm:$0xf]
        %v442 = vld [vmem:[%s363 + $0x4] sm:$0xf]
        %v443 = vld [vmem:[#allocation7] sm:$0xf]
        %v444 = vld [vmem:[#allocation7 + $0x4] sm:$0xf]
        %v445 = vld [vmem:[#allocation7 + $0x8] sm:$0xf]
        %v446 = vld [vmem:[#allocation7 + $0xc] sm:$0xf]
        %v447 = vld [vmem:[#allocation7 + $0x10] sm:$0xf]
        %v448 = vld [vmem:[#allocation7 + $0x14] sm:$0xf]
        %v449 = vld [vmem:[#allocation7 + $0x18] sm:$0xf]
        %v450 = vld [vmem:[#allocation7 + $0x1c] sm:$0xf]
        %v451 = vld [vmem:[#allocation7 + $0x20] sm:$0xf]
        %v452 = vld [vmem:[#allocation7 + $0x24] sm:$0xf]
        %v453 = vld [vmem:[#allocation7 + $0x28] sm:$0xf]
        %v454 = vld [vmem:[#allocation7 + $0x2c] sm:$0xf]
        %v455 = vld [vmem:[#allocation7 + $0x30] sm:$0xf]
        %v456 = vld [vmem:[#allocation7 + $0x34] sm:$0xf]
        %v457 = vld [vmem:[#allocation7 + $0x38] sm:$0xf]
        %v458 = vld [vmem:[#allocation7 + $0x3c] sm:$0xf]
        %v459 = vld [vmem:[#allocation8] sm:$0x1]
        %v461 = vlaneseq
        %v462 = vshrl.u32 %v461, 7
        %v463 = vsub.s32 0, %v462
        %v464 = vrot.slane %v459, %v463
        %v468 = vunpack.c.l.b16 %v441
        %v469 = vunpack.c.l.b16 %v442
        %v470 = vpack.c.b16 %v469, %v468
        %v488 = vunpack.c.l.b16 %v443
        %v489 = vunpack.c.l.b16 %v444
        %v490 = vunpack.c.l.b16 %v445
        %v491 = vunpack.c.l.b16 %v446
        %v492 = vunpack.c.l.b16 %v447
        %v493 = vunpack.c.l.b16 %v448
        %v494 = vunpack.c.l.b16 %v449
        %v495 = vunpack.c.l.b16 %v450
        %v496 = vunpack.c.l.b16 %v451
        %v497 = vunpack.c.l.b16 %v452
        %v498 = vunpack.c.l.b16 %v453
        %v499 = vunpack.c.l.b16 %v454
        %v500 = vunpack.c.l.b16 %v455
        %v501 = vunpack.c.l.b16 %v456
        %v502 = vunpack.c.l.b16 %v457
        %v503 = vunpack.c.l.b16 %v458
        %v504 = vpack.c.b16 %v489, %v488
        %v505 = vpack.c.b16 %v491, %v490
        %v506 = vpack.c.b16 %v493, %v492
        %v507 = vpack.c.b16 %v495, %v494
        %v508 = vpack.c.b16 %v497, %v496
        %v509 = vpack.c.b16 %v499, %v498
        %v510 = vpack.c.b16 %v501, %v500
        %v511 = vpack.c.b16 %v503, %v502
        %520 = vmatprep.subr.bf16.mxu0 0
        %521 = vmatpush1.bf16.msra.mxu0 %v504
        %522 = vmatprep.subr.bf16.mxu0 0
        %523 = vmatpush1.bf16.msra.mxu0 %v505
        %524 = vmatprep.subr.bf16.mxu0 0
        %525 = vmatpush1.bf16.msra.mxu0 %v506
        %526 = vmatprep.subr.bf16.mxu0 0
        %527 = vmatpush1.bf16.msra.mxu0 %v507
        %528 = vmatprep.subr.bf16.mxu0 0
        %529 = vmatpush1.bf16.msra.mxu0 %v508
        %530 = vmatprep.subr.bf16.mxu0 0
        %531 = vmatpush1.bf16.msra.mxu0 %v509
        %532 = vmatprep.subr.bf16.mxu0 0
        %533 = vmatpush1.bf16.msra.mxu0 %v510
        %534 = vmatprep.subr.bf16.mxu0 0
        %535 = vmatpush1.bf16.msra.mxu0 %v511
        %536 = vmatprep.subr.bf16.mxu0 0
        %537 = vmatpush1.bf16.msra.mxu0 0
        %538 = vmatprep.subr.bf16.mxu0 0
        %539 = vmatpush1.bf16.msra.mxu0 0
        %540 = vmatprep.subr.bf16.mxu0 0
        %541 = vmatpush1.bf16.msra.mxu0 0
        %542 = vmatprep.subr.bf16.mxu0 0
        %543 = vmatpush1.bf16.msra.mxu0 0
        %544 = vmatprep.subr.bf16.mxu0 0
        %545 = vmatpush1.bf16.msra.mxu0 0
        %546 = vmatprep.subr.bf16.mxu0 0
        %547 = vmatpush1.bf16.msra.mxu0 0
        %548 = vmatprep.subr.bf16.mxu0 0
        %549 = vmatpush1.bf16.msra.mxu0 0
        %550 = vmatprep.subr.bf16.mxu0 0
        %551 = vmatpush1.bf16.msra.mxu0 0
        %552 = vmatprep.mubr.bf16.mxu0 0
        %553 = vmatmul.mubr.bf16.gmra.mrb[0].mxu0 %v470
        %v554 = vpop.f32.mrb[0].mxu0
        %v555 = vadd.f32 %v464, %v554
        %v556 = vpop.f32.mrb[0].mxu0
        %v557 = vpop.f32.mrb[0].mxu0
        %v558 = vadd.f32 %v464, %v557
        %v559 = vpop.f32.mrb[0].mxu0
        %560 = vdwg.mxu0
        %v561 = vmax.f32 %v555, 0.0
        %v562 = vmax.f32 %v558, 0.0
        %v563 = vld [vmem:[%s372] sm:$0xf]
        %v564 = vld [vmem:[%s372 + $0x4] sm:$0xf]
        %v565 = vunpack.c.l.bf16 %v563
        %v566 = vunpack.c.l.bf16 %v564
        %v567 = vadd.f32 %v561, %v565
        %v568 = vadd.f32 %v562, %v566
        %v569 = vpack.c.bf16 %v568, %v567
        %v570 = vld [vmem:[#allocation11] sm:$0xf]
        %v571 = vld [vmem:[#allocation11 + $0x4] sm:$0xf]
        %v572 = vld [vmem:[#allocation11 + $0x8] sm:$0xf]
        %v573 = vld [vmem:[#allocation11 + $0xc] sm:$0xf]
        %v574 = vld [vmem:[#allocation11 + $0x10] sm:$0xf]
        %v575 = vld [vmem:[#allocation11 + $0x14] sm:$0xf]
        %v576 = vld [vmem:[#allocation11 + $0x18] sm:$0xf]
        %v577 = vld [vmem:[#allocation11 + $0x1c] sm:$0xf]
        %v578 = vld [vmem:[#allocation11 + $0x20] sm:$0xf]
        %v579 = vld [vmem:[#allocation11 + $0x24] sm:$0xf]
        %v580 = vld [vmem:[#allocation11 + $0x28] sm:$0xf]
        %v581 = vld [vmem:[#allocation11 + $0x2c] sm:$0xf]
        %v582 = vld [vmem:[#allocation11 + $0x30] sm:$0xf]
        %v583 = vld [vmem:[#allocation11 + $0x34] sm:$0xf]
        %v584 = vld [vmem:[#allocation11 + $0x38] sm:$0xf]
        %v585 = vld [vmem:[#allocation11 + $0x3c] sm:$0xf]
        %v586 = vld [vmem:[#allocation10] sm:$0x1]
        %v588 = vlaneseq
        %v589 = vshrl.u32 %v588, 7
        %v590 = vsub.s32 0, %v589
        %v591 = vrot.slane %v586, %v590
        %v609 = vunpack.c.l.b16 %v570
        %v610 = vunpack.c.l.b16 %v571
        %v611 = vunpack.c.l.b16 %v572
        %v612 = vunpack.c.l.b16 %v573
        %v613 = vunpack.c.l.b16 %v574
        %v614 = vunpack.c.l.b16 %v575
        %v615 = vunpack.c.l.b16 %v576
        %v616 = vunpack.c.l.b16 %v577
        %v617 = vunpack.c.l.b16 %v578
        %v618 = vunpack.c.l.b16 %v579
        %v619 = vunpack.c.l.b16 %v580
        %v620 = vunpack.c.l.b16 %v581
        %v621 = vunpack.c.l.b16 %v582
        %v622 = vunpack.c.l.b16 %v583
        %v623 = vunpack.c.l.b16 %v584
        %v624 = vunpack.c.l.b16 %v585
        %v625 = vpack.c.b16 %v610, %v609
        %v626 = vpack.c.b16 %v612, %v611
        %v627 = vpack.c.b16 %v614, %v613
        %v628 = vpack.c.b16 %v616, %v615
        %v629 = vpack.c.b16 %v618, %v617
        %v630 = vpack.c.b16 %v620, %v619
        %v631 = vpack.c.b16 %v622, %v621
        %v632 = vpack.c.b16 %v624, %v623
        %641 = vmatprep.subr.bf16.mxu0 0
        %642 = vmatpush1.bf16.msra.mxu0 %v625
        %643 = vmatprep.subr.bf16.mxu0 0
        %644 = vmatpush1.bf16.msra.mxu0 %v626
        %645 = vmatprep.subr.bf16.mxu0 0
        %646 = vmatpush1.bf16.msra.mxu0 %v627
        %647 = vmatprep.subr.bf16.mxu0 0
        %648 = vmatpush1.bf16.msra.mxu0 %v628
        %649 = vmatprep.subr.bf16.mxu0 0
        %650 = vmatpush1.bf16.msra.mxu0 %v629
        %651 = vmatprep.subr.bf16.mxu0 0
        %652 = vmatpush1.bf16.msra.mxu0 %v630
        %653 = vmatprep.subr.bf16.mxu0 0
        %654 = vmatpush1.bf16.msra.mxu0 %v631
        %655 = vmatprep.subr.bf16.mxu0 0
        %656 = vmatpush1.bf16.msra.mxu0 %v632
        %657 = vmatprep.subr.bf16.mxu0 0
        %658 = vmatpush1.bf16.msra.mxu0 0
        %659 = vmatprep.subr.bf16.mxu0 0
        %660 = vmatpush1.bf16.msra.mxu0 0
        %661 = vmatprep.subr.bf16.mxu0 0
        %662 = vmatpush1.bf16.msra.mxu0 0
        %663 = vmatprep.subr.bf16.mxu0 0
        %664 = vmatpush1.bf16.msra.mxu0 0
        %665 = vmatprep.subr.bf16.mxu0 0
        %666 = vmatpush1.bf16.msra.mxu0 0
        %667 = vmatprep.subr.bf16.mxu0 0
        %668 = vmatpush1.bf16.msra.mxu0 0
        %669 = vmatprep.subr.bf16.mxu0 0
        %670 = vmatpush1.bf16.msra.mxu0 0
        %671 = vmatprep.subr.bf16.mxu0 0
        %672 = vmatpush1.bf16.msra.mxu0 0
        %673 = vmatprep.mubr.bf16.mxu0 0
        %674 = vmatmul.mubr.bf16.gmra.mrb[0].mxu0 %v569
        %v675 = vpop.f32.mrb[0].mxu0
        %v676 = vadd.f32 %v591, %v675
        %v677 = vpop.f32.mrb[0].mxu0
        %v678 = vpop.f32.mrb[0].mxu0
        %v679 = vadd.f32 %v591, %v678
        %v680 = vpop.f32.mrb[0].mxu0
        %681 = vdwg.mxu0
        %682 = vst [vmem:[%s421] sm:$0xff] %v561
        %683 = vst [vmem:[%s421 + $0x8] sm:$0xff] %v562
        %684 = vst [vmem:[%s428] sm:$0xff] %v676
        %685 = vst [vmem:[%s428 + $0x8] sm:$0xff] %v679
        %v686 = vunpack.c.l.bf16 %v441
        %v687 = vunpack.c.l.bf16 %v442
        %v688 = vsub.f32 %v676, %v686
        %v689 = vsub.f32 %v679, %v687
        %v690 = vadd.f32 %v561, %v562
        %v691 = vrot.slane %v690, 4
        %v692 = vadd.f32 %v690, %v691
        %v693 = vrot.slane %v692, 2
        %v694 = vadd.f32 %v692, %v693
        %v695 = vrot.slane %v694, 1
        %v696 = vadd.f32 %v694, %v695
        %vm697 = vcmp.gt.f32.partialorder %v561, 1e-08
        %vm698 = vcmp.gt.f32.partialorder %v562, 1e-08
        %v699 = vsel %vm697, 1, 0
        %v700 = vsel %vm698, 1, 0
        %v701 = vcvt.s32.f32 %v699
        %v702 = vcvt.s32.f32 %v700
        %v703 = vadd.f32 %v701, %v702
        %v704 = vrot.slane %v703, 4
        %v705 = vadd.f32 %v703, %v704
        %v706 = vrot.slane %v705, 2
        %v707 = vadd.f32 %v705, %v706
        %v708 = vrot.slane %v707, 1
        %v709 = vadd.f32 %v707, %v708
        %v710 = vmul.f32 %v688, %v688
        %v711 = vmul.f32 %v689, %v689
        %712 = vadd.xlane.f32.xlu0 %v710
        %v713 = vpop.xlane.xlu0 %712
        %714 = vadd.xlane.f32.xlu0 %v711
        %v715 = vpop.xlane.xlu0 %714
        %v716 = vadd.f32 %v713, %v715
        %v717 = vrot.slane %v716, 4
        %v718 = vadd.f32 %v716, %v717
        %v719 = vrot.slane %v718, 2
        %v720 = vadd.f32 %v718, %v719
        %v721 = vrot.slane %v720, 1
        %v722 = vadd.f32 %v720, %v721
        %v723 = vadd.f32 %v722, 0.0
        %vm724 = vcmask 1040384
        %v725 = vsel %vm724, %v696, %v709
        %vm726 = vcmask 1041408
        %v727 = vsel %vm726, %v725, %v723
        %728 = vst [vmem:[%s435] sm:$0x7] %v727
        %s729 = sand.u32 %s178, 1
        %s730 = scalar_lea.sflag [#allocation4], %s729
        %s731 = sand.u32 %s178, 1
        %s732 = smul.addr %s731, 16
        %s733 = scalar_lea.vmem [#allocation13], %s732
        %s734 = sand.u32 %s34, 1
        %s735 = scalar_lea.sflag [#allocation15], %s734
        %s736 = sand.u32 %s204, 1
        %s737 = smul.addr %s736, 16
        %s738 = scalar_lea.vmem [#allocation14], %s737
        %s739 = sand.u32 %s34, 1
        %s740 = scalar_lea.sflag [#allocation15], %s739
        %s741 = sand.u32 %s230, 1
        %s742 = smul.addr %s741, 4
        %s743 = scalar_lea.vmem [#allocation16], %s742
        // Predicated region
        $region69: #{tpu_custom_call.1} parent=43 // pred_check
          %p744 = pneg %p188
        $region70: #{tpu_custom_call.1} parent=43 // pred_check_branch
          %746 = sbr.rel (%p744) target = $region72
        $region71: #{tpu_custom_call.1} parent=43 // pred_region
          %s747 = smul.u32 2, %s34
          %s749 = ssub.s32 256, 256
          %750 = vsyncadd %s730, %s749
          %s751 = smul.addr %s747, 128
          %s752 = scalar_lea.hbm %s6, %s751
          %s753 = sshll.u32 %s733, 4
          %s754 = int_to_ptr.vmem [resolvable:$true] %s753
          %759 = dma.vmem_to_hbm [thread:$0]  %s754, 256, %s752, %s730, 128, 128, 8
        $region72: #{tpu_custom_call.1} parent=43 // pred_fallthru
          _
        // Predicated region
        $region73: #{tpu_custom_call.1} parent=43 // pred_check
          %p760 = pneg %p214
        $region74: #{tpu_custom_call.1} parent=43 // pred_check_branch
          %762 = sbr.rel (%p760) target = $region76
        $region75: #{tpu_custom_call.1} parent=43 // pred_region
          %s763 = smul.u32 2, %s34
          %s765 = ssub.s32 256, 256
          %766 = vsyncadd %s735, %s765
          %s767 = smul.addr %s763, 128
          %s768 = scalar_lea.hbm %s7, %s767
          %s769 = sshll.u32 %s738, 4
          %s770 = int_to_ptr.vmem [resolvable:$true] %s769
          %775 = dma.vmem_to_hbm [thread:$0]  %s770, 256, %s768, %s735, 128, 128, 8
        $region76: #{tpu_custom_call.1} parent=43 // pred_fallthru
          _
        // Predicated region
        $region77: #{tpu_custom_call.1} parent=43 // pred_check
          %p776 = pneg %p240
        $region78: #{tpu_custom_call.1} parent=43 // pred_check_branch
          %778 = sbr.rel (%p776) target = $region80
        $region79: #{tpu_custom_call.1} parent=43 // pred_region
          %s780 = ssub.s32 64, 64
          %781 = vsyncadd %s740, %s780
          %s782 = smul.addr %s34, 64
          %s783 = scalar_lea.hbm %s8, %s782
          %s785 = sshll.u32 %s743, 4
          %s786 = int_to_ptr.vmem [resolvable:$true] %s785
          %788 = dma.vmem_to_hbm [thread:$0]  %s786, 64, %s783, %s740
        $region80: #{tpu_custom_call.1} parent=43 // pred_fallthru
          _
      $region44: #{tpu_custom_call.1} parent=5 // pred_fallthru
        _
      %p789 = scmp.le.s32.totalorder 2, %s29
      // Predicated region
      $region81: #{tpu_custom_call.1} parent=5 // pred_check
        %p790 = pneg %p789
      $region82: #{tpu_custom_call.1} parent=5 // pred_check_branch
        %792 = sbr.rel (%p790) target = $region84
      $region83: #{tpu_custom_call.1} parent=5 // pred_region
        %s793 = ssub.s32 %s29, 2
        // Predicated region
        $region85: #{tpu_custom_call.1} parent=83 // pred_check
          %p794 = pneg %p194
        $region86: #{tpu_custom_call.1} parent=83 // pred_check_branch
          %796 = sbr.rel (%p794) target = $region88
        $region87: #{tpu_custom_call.1} parent=83 // pred_region
          %s797 = sand.u32 %s179, 1
          %s798 = scalar_lea.sflag [#allocation4], %s797
          %s799 = sand.u32 %s179, 1
          %s800 = smul.addr %s799, 16
          %s801 = scalar_lea.vmem [#allocation13], %s800
          %802 = dma.done %s798, 256
        $region88: #{tpu_custom_call.1} parent=83 // pred_fallthru
          _
        // Predicated region
        $region89: #{tpu_custom_call.1} parent=83 // pred_check
          %p803 = pneg %p220
        $region90: #{tpu_custom_call.1} parent=83 // pred_check_branch
          %805 = sbr.rel (%p803) target = $region92
        $region91: #{tpu_custom_call.1} parent=83 // pred_region
          %s806 = sand.u32 %s35, 1
          %s807 = scalar_lea.sflag [#allocation15], %s806
          %s808 = sand.u32 %s205, 1
          %s809 = smul.addr %s808, 16
          %s810 = scalar_lea.vmem [#allocation14], %s809
          %811 = dma.done %s807, 256
        $region92: #{tpu_custom_call.1} parent=83 // pred_fallthru
          _
        // Predicated region
        $region93: #{tpu_custom_call.1} parent=83 // pred_check
          %p812 = pneg %p246
        $region94: #{tpu_custom_call.1} parent=83 // pred_check_branch
          %814 = sbr.rel (%p812) target = $region96
        $region95: #{tpu_custom_call.1} parent=83 // pred_region
          %s815 = sand.u32 %s35, 1
          %s816 = scalar_lea.sflag [#allocation15], %s815
          %s817 = sand.u32 %s231, 1
          %s818 = smul.addr %s817, 4
          %s819 = scalar_lea.vmem [#allocation16], %s818
          %820 = dma.done %s816, 64
        $region96: #{tpu_custom_call.1} parent=83 // pred_fallthru
          _
      $region84: #{tpu_custom_call.1} parent=5 // pred_fallthru
        _
    $region6: #{tpu_custom_call.1} parent=1 // loop_footer
      %s33 = sadd.s32 1, %s29
    $region7: #{tpu_custom_call.1} parent=1 // loop_footer_branch
      %28 = sbr.rel target = $region3
    $region8: #{tpu_custom_call.1} parent=1 // loop_exit
      _
    %821 = vsyncpa [#allocation3], 1
    %s822 = scalar_lea.sflag [#allocation3], 1
    %823 = vsyncpa %s822, 1
    %824 = vsyncpa [#allocation6], 1
    %s825 = scalar_lea.sflag [#allocation6], 1
    %826 = vsyncpa %s825, 1
    %827 = vsyncpa [#allocation9], 1
    %828 = vsyncpa [#allocation12], 1
    %829 = vsyncpa [#allocation4], 1
    %s830 = scalar_lea.sflag [#allocation4], 1
    %831 = vsyncpa %s830, 1
    %832 = vsyncpa [#allocation15], 1
    %s833 = scalar_lea.sflag [#allocation15], 1
    %834 = vsyncpa %s833, 1

// kernel: tpu_custom_call.1
$region0: #{tpu_custom_call.1}
  #allocation0 [shape = 'u32[]', space=smem, size = 0x4, offset = 0x4, fixed_abs, tag = 'smem constant byte address 0x4 - core index']
  #allocation1 [shape = 'u32[144,128]{1,0:T(1,128)}', space=vmem, size = 0x12000, scoped, tag = 'internal scratch']
  %s0 = inlined_call_operand.hbm [shape: bf16[32,128], index: 0, kind: input, shape index: {}]
  %s1 = inlined_call_operand.hbm [shape: bf16[32,128], index: 1, kind: input, shape index: {}]
  %s2 = inlined_call_operand.hbm [shape: bf16[128,128], index: 2, kind: input, shape index: {}]
  %s3 = inlined_call_operand.hbm [shape: f32[1,128], index: 3, kind: input, shape index: {}]
  %s4 = inlined_call_operand.hbm [shape: f32[1,128], index: 4, kind: input, shape index: {}]
  %s5 = inlined_call_operand.hbm [shape: bf16[128,128], index: 5, kind: input, shape index: {}]
  %s6 = inlined_call_operand.hbm [shape: f32[32,128], index: 6, kind: output, shape index: {0}]
  %s7 = inlined_call_operand.hbm [shape: f32[32,128], index: 7, kind: output, shape index: {1}]
  %s8 = inlined_call_operand.hbm [shape: f32[2,3,128], index: 8, kind: output, shape index: {2}]
  %9 = xla_tuple %s6, %s7, %s8
  %s10 = sld [smem:[#allocation0]]
  $region97: #{tpu_custom_call.1} parent=0
    _
  %s12 = ssub.s32 1, %s10
  %s13 = scalar_select 0, %s12, %s10
  $region1: #{tpu_custom_call.1} parent=0
    #allocation2 [shape = 'u8[8192]{0}', space=vmem, size = 0x2000, scoped, tag = 'input window, operand 0']
    #allocation3 [shape = 's32[2]{0}', space=sflag, size = 0x8, scoped, tag = 'scoped memory for tpu_custom_call.1']
    #allocation4 [shape = 's32[2]{0}', space=sflag, size = 0x8, scoped, tag = 'scoped memory for tpu_custom_call.1']
    #allocation5 [shape = 'u8[8192]{0}', space=vmem, size = 0x2000, scoped, tag = 'input window, operand 1']
    #allocation6 [shape = 's32[2]{0}', space=sflag, size = 0x8, scoped, tag = 'scoped memory for tpu_custom_call.1']
    #allocation7 [shape = 'u8[32768]{0}', space=vmem, size = 0x8000, scoped, tag = 'input window, operand 2, single buffered']
    #allocation8 [shape = 'u8[512]{0}', space=vmem, size = 0x400, scoped, tag = 'input window, operand 3, single buffered']
    #allocation9 [shape = 's32[1]{0}', space=sflag, size = 0x4, scoped, tag = 'scoped memory for tpu_custom_call.1']
    #allocation10 [shape = 'u8[512]{0}', space=vmem, size = 0x400, scoped, tag = 'input window, operand 4, single buffered']
    #allocation11 [shape = 'u8[32768]{0}', space=vmem, size = 0x8000, scoped, tag = 'input window, operand 5, single buffered']
    #allocation12 [shape = 's32[1]{0}', space=sflag, size = 0x4, scoped, tag = 'scoped memory for tpu_custom_call.1']
    #allocation13 [shape = 'u8[16384]{0}', space=vmem, size = 0x4000, scoped, tag = 'output window, operand 0']
    #allocation14 [shape = 'u8[16384]{0}', space=vmem, size = 0x4000, scoped, tag = 'output window, operand 1']
    #allocation15 [shape = 's32[2]{0}', space=sflag, size = 0x8, scoped, tag = 'scoped memory for tpu_custom_call.1']
    #allocation16 [shape = 'u8[4096]{0}', space=vmem, size = 0x1000, scoped, tag = 'output window, operand 2']
    %14 = vsyncpa [#allocation3], 0
    %s15 = scalar_lea.sflag [#allocation3], 1
    %16 = vsyncpa %s15, 0
    %17 = vsyncpa [#allocation6], 0
    %s18 = scalar_lea.sflag [#allocation6], 1
    %19 = vsyncpa %s18, 0
    %20 = vsyncpa [#allocation9], 0
    %21 = vsyncpa [#allocation12], 0
    %22 = vsyncpa [#allocation4], 0
    %s23 = scalar_lea.sflag [#allocation4], 1
    %24 = vsyncpa %s23, 0
    %25 = vsyncpa [#allocation15], 0
    %s26 = scalar_lea.sflag [#allocation15], 1
    %27 = vsyncpa %s26, 0
    loop: start=0, step=1, limit=4
    $region2: #{tpu_custom_call.1} parent=1 // loop_pre_header
      _
    $region3: #{tpu_custom_call.1} parent=1 // loop_header
      %s29 = sphi 0, %s33
      %p30 = scmp.ge.s32.totalorder %s29, 4
      %s39 = sphi 0, %s41
      %s42 = sphi 0, %s39
      %s43 = sphi 0, %s42
      %s59 = sphi 0, %s43
      %s65 = sphi 0, %s67
      %s68 = sphi 0, %s65
      %s69 = sphi 0, %s68
      %s85 = sphi 0, %s69
      %s89 = sphi 0, %s89
      %s91 = sphi 0, %s89
      %s92 = sphi 0, %s91
      %s106 = sphi 0, %s92
      %s110 = sphi 0, %s110
      %s112 = sphi 0, %s110
      %s113 = sphi 0, %s112
      %s127 = sphi 0, %s113
      %s131 = sphi 0, %s131
      %s133 = sphi 0, %s131
      %s134 = sphi 0, %s133
      %s148 = sphi 0, %s134
      %s152 = sphi 0, %s152
      %s154 = sphi 0, %s152
      %s155 = sphi 0, %s154
      %s169 = sphi 0, %s155
      %s175 = sphi 0, %s177
      %s178 = sphi 0, %s175
      %s179 = sphi 0, %s178
      %s195 = sphi 0, %s179
      %s201 = sphi 0, %s203
      %s204 = sphi 0, %s201
      %s205 = sphi 0, %s204
      %s221 = sphi 0, %s205
      %s227 = sphi 0, %s229
      %s230 = sphi 0, %s227
      %s231 = sphi 0, %s230
      %s247 = sphi 0, %s231
    $region4: #{tpu_custom_call.1} parent=1 // loop_header_branch
      %32 = sbr.rel (%p30) target = $region8
    $region5: #{tpu_custom_call.1} parent=1 // loop_body
      %s34 = ssub.s32 %s29, 1
      %s35 = ssub.s32 %s29, 2
      %s36 = sadd.s32 %s29, 1
      %s37 = ssub.s32 %s29, %s36
      %p38 = scmp.eq.s32.totalorder %s37, 0
      %s40 = sadd.s32 %s39, 1
      %s41 = scalar_select %p38, %s39, %s40
      %p44 = pneg %p38
      %p45 = scmp.eq.s32.totalorder %s29, 1
      %p46 = por %p44, %p45
      %p47 = scmp.ne.s32.totalorder %s39, %s42
      %p48 = scmp.eq.s32.totalorder %s29, 0
      %p49 = por %p47, %p48
      %p50 = scmp.ne.s32.totalorder %s39, %s42
      %p51 = scmp.eq.s32.totalorder %s34, 1
      %p52 = por %p50, %p51
      %p53 = scmp.ne.s32.totalorder %s42, %s43
      %p54 = scmp.eq.s32.totalorder %s34, 0
      %p55 = por %p53, %p54
      %p56 = scmp.ne.s32.totalorder %s42, %s43
      %p57 = scmp.eq.s32.totalorder %s35, 1
      %p58 = por %p56, %p57
      %p60 = scmp.ne.s32.totalorder %s43, %s59
      %p61 = scmp.eq.s32.totalorder %s35, 0
      %p62 = por %p60, %p61
      %s63 = ssub.s32 %s29, %s36
      %p64 = scmp.eq.s32.totalorder %s63, 0
      %s66 = sadd.s32 %s65, 1
      %s67 = scalar_select %p64, %s65, %s66
      %p70 = pneg %p64
      %p71 = scmp.eq.s32.totalorder %s29, 1
      %p72 = por %p70, %p71
      %p73 = scmp.ne.s32.totalorder %s65, %s68
      %p74 = scmp.eq.s32.totalorder %s29, 0
      %p75 = por %p73, %p74
      %p76 = scmp.ne.s32.totalorder %s65, %s68
      %p77 = scmp.eq.s32.totalorder %s34, 1
      %p78 = por %p76, %p77
      %p79 = scmp.ne.s32.totalorder %s68, %s69
      %p80 = scmp.eq.s32.totalorder %s34, 0
      %p81 = por %p79, %p80
      %p82 = scmp.ne.s32.totalorder %s68, %s69
      %p83 = scmp.eq.s32.totalorder %s35, 1
      %p84 = por %p82, %p83
      %p86 = scmp.ne.s32.totalorder %s69, %s85
      %p87 = scmp.eq.s32.totalorder %s35, 0
      %p88 = por %p86, %p87
      %s90 = sadd.s32 %s89, 1
      %p93 = scmp.eq.s32.totalorder %s29, 1
      %p94 = scmp.ne.s32.totalorder %s89, %s91
      %p95 = scmp.eq.s32.totalorder %s29, 0
      %p96 = por %p94, %p95
      %p97 = scmp.ne.s32.totalorder %s89, %s91
      %p98 = scmp.eq.s32.totalorder %s34, 1
      %p99 = por %p97, %p98
      %p100 = scmp.ne.s32.totalorder %s91, %s92
      %p101 = scmp.eq.s32.totalorder %s34, 0
      %p102 = por %p100, %p101
      %p103 = scmp.ne.s32.totalorder %s91, %s92
      %p104 = scmp.eq.s32.totalorder %s35, 1
      %p105 = por %p103, %p104
      %p107 = scmp.ne.s32.totalorder %s92, %s106
      %p108 = scmp.eq.s32.totalorder %s35, 0
      %p109 = por %p107, %p108
      %s111 = sadd.s32 %s110, 1
      %p114 = scmp.eq.s32.totalorder %s29, 1
      %p115 = scmp.ne.s32.totalorder %s110, %s112
      %p116 = scmp.eq.s32.totalorder %s29, 0
      %p117 = por %p115, %p116
      %p118 = scmp.ne.s32.totalorder %s110, %s112
      %p119 = scmp.eq.s32.totalorder %s34, 1
      %p120 = por %p118, %p119
      %p121 = scmp.ne.s32.totalorder %s112, %s113
      %p122 = scmp.eq.s32.totalorder %s34, 0
      %p123 = por %p121, %p122
      %p124 = scmp.ne.s32.totalorder %s112, %s113
      %p125 = scmp.eq.s32.totalorder %s35, 1
      %p126 = por %p124, %p125
      %p128 = scmp.ne.s32.totalorder %s113, %s127
      %p129 = scmp.eq.s32.totalorder %s35, 0
      %p130 = por %p128, %p129
      %s132 = sadd.s32 %s131, 1
      %p135 = scmp.eq.s32.totalorder %s29, 1
      %p136 = scmp.ne.s32.totalorder %s131, %s133
      %p137 = scmp.eq.s32.totalorder %s29, 0
      %p138 = por %p136, %p137
      %p139 = scmp.ne.s32.totalorder %s131, %s133
      %p140 = scmp.eq.s32.totalorder %s34, 1
      %p141 = por %p139, %p140
      %p142 = scmp.ne.s32.totalorder %s133, %s134
      %p143 = scmp.eq.s32.totalorder %s34, 0
      %p144 = por %p142, %p143
      %p145 = scmp.ne.s32.totalorder %s133, %s134
      %p146 = scmp.eq.s32.totalorder %s35, 1
      %p147 = por %p145, %p146
      %p149 = scmp.ne.s32.totalorder %s134, %s148
      %p150 = scmp.eq.s32.totalorder %s35, 0
      %p151 = por %p149, %p150
      %s153 = sadd.s32 %s152, 1
      %p156 = scmp.eq.s32.totalorder %s29, 1
      %p157 = scmp.ne.s32.totalorder %s152, %s154
      %p158 = scmp.eq.s32.totalorder %s29, 0
      %p159 = por %p157, %p158
      %p160 = scmp.ne.s32.totalorder %s152, %s154
      %p161 = scmp.eq.s32.totalorder %s34, 1
      %p162 = por %p160, %p161
      %p163 = scmp.ne.s32.totalorder %s154, %s155
      %p164 = scmp.eq.s32.totalorder %s34, 0
      %p165 = por %p163, %p164
      %p166 = scmp.ne.s32.totalorder %s154, %s155
      %p167 = scmp.eq.s32.totalorder %s35, 1
      %p168 = por %p166, %p167
      %p170 = scmp.ne.s32.totalorder %s155, %s169
      %p171 = scmp.eq.s32.totalorder %s35, 0
      %p172 = por %p170, %p171
      %s173 = ssub.s32 %s29, %s36
      %p174 = scmp.eq.s32.totalorder %s173, 0
      %s176 = sadd.s32 %s175, 1
      %s177 = scalar_select %p174, %s175, %s176
      %p180 = pneg %p174
      %p181 = scmp.eq.s32.totalorder %s29, 1
      %p182 = por %p180, %p181
      %p183 = scmp.ne.s32.totalorder %s175, %s178
      %p184 = scmp.eq.s32.totalorder %s29, 0
      %p185 = por %p183, %p184
      %p186 = scmp.ne.s32.totalorder %s175, %s178
      %p187 = scmp.eq.s32.totalorder %s34, 1
      %p188 = por %p186, %p187
      %p189 = scmp.ne.s32.totalorder %s178, %s179
      %p190 = scmp.eq.s32.totalorder %s34, 0
      %p191 = por %p189, %p190
      %p192 = scmp.ne.s32.totalorder %s178, %s179
      %p193 = scmp.eq.s32.totalorder %s35, 1
      %p194 = por %p192, %p193
      %p196 = scmp.ne.s32.totalorder %s179, %s195
      %p197 = scmp.eq.s32.totalorder %s35, 0
      %p198 = por %p196, %p197
      %s199 = ssub.s32 %s29, %s36
      %p200 = scmp.eq.s32.totalorder %s199, 0
      %s202 = sadd.s32 %s201, 1
      %s203 = scalar_select %p200, %s201, %s202
      %p206 = pneg %p200
      %p207 = scmp.eq.s32.totalorder %s29, 1
      %p208 = por %p206, %p207
      %p209 = scmp.ne.s32.totalorder %s201, %s204
      %p210 = scmp.eq.s32.totalorder %s29, 0
      %p211 = por %p209, %p210
      %p212 = scmp.ne.s32.totalorder %s201, %s204
      %p213 = scmp.eq.s32.totalorder %s34, 1
      %p214 = por %p212, %p213
      %p215 = scmp.ne.s32.totalorder %s204, %s205
      %p216 = scmp.eq.s32.totalorder %s34, 0
      %p217 = por %p215, %p216
      %p218 = scmp.ne.s32.totalorder %s204, %s205
      %p219 = scmp.eq.s32.totalorder %s35, 1
      %p220 = por %p218, %p219
      %p222 = scmp.ne.s32.totalorder %s205, %s221
      %p223 = scmp.eq.s32.totalorder %s35, 0
      %p224 = por %p222, %p223
      %s225 = ssub.s32 %s29, %s36
      %p226 = scmp.eq.s32.totalorder %s225, 0
      %s228 = sadd.s32 %s227, 1
      %s229 = scalar_select %p226, %s227, %s228
      %p232 = pneg %p226
      %p233 = scmp.eq.s32.totalorder %s29, 1
      %p234 = por %p232, %p233
      %p235 = scmp.ne.s32.totalorder %s227, %s230
      %p236 = scmp.eq.s32.totalorder %s29, 0
      %p237 = por %p235, %p236
      %p238 = scmp.ne.s32.totalorder %s227, %s230
      %p239 = scmp.eq.s32.totalorder %s34, 1
      %p240 = por %p238, %p239
      %p241 = scmp.ne.s32.totalorder %s230, %s231
      %p242 = scmp.eq.s32.totalorder %s34, 0
      %p243 = por %p241, %p242
      %p244 = scmp.ne.s32.totalorder %s230, %s231
      %p245 = scmp.eq.s32.totalorder %s35, 1
      %p246 = por %p244, %p245
      %p248 = scmp.ne.s32.totalorder %s231, %s247
      %p249 = scmp.eq.s32.totalorder %s35, 0
      %p250 = por %p248, %p249
      %p251 = scmp.le.s32.totalorder 1, %s29
      %p252 = scmp.lt.s32.totalorder %s29, 3
      %p253 = pnand %p251, %p252
      %p254 = pneg %p253
      // Predicated region
      $region9: #{tpu_custom_call.1} parent=5 // pred_check
        _
      $region10: #{tpu_custom_call.1} parent=5 // pred_check_branch
        %256 = sbr.rel (%p253) target = $region12
      $region11: #{tpu_custom_call.1} parent=5 // pred_region
        %s257 = ssub.s32 %s29, 1
        // Predicated region
        $region13: #{tpu_custom_call.1} parent=11 // pred_check
          %p258 = pneg %p102
        $region14: #{tpu_custom_call.1} parent=11 // pred_check_branch
          %260 = sbr.rel (%p258) target = $region16
        $region15: #{tpu_custom_call.1} parent=11 // pred_region
          %s262 = ssub.s32 1024, 1024
          %263 = vsyncadd [#allocation6], %s262
          %s264 = sshll.u32 [#allocation7], 4
          %s265 = int_to_ptr.vmem [resolvable:$true] %s264
          %270 = dma.hbm_to_vmem [thread:$0]  %s2, 1024, %s265, [#allocation6], 64, 64, 4
        $region16: #{tpu_custom_call.1} parent=11 // pred_fallthru
          _
        // Predicated region
        $region17: #{tpu_custom_call.1} parent=11 // pred_check
          %p271 = pneg %p123
        $region18: #{tpu_custom_call.1} parent=11 // pred_check_branch
          %273 = sbr.rel (%p271) target = $region20
        $region19: #{tpu_custom_call.1} parent=11 // pred_region
          %s275 = ssub.s32 16, 16
          %276 = vsyncadd [#allocation9], %s275
          %s278 = sshll.u32 [#allocation8], 4
          %s279 = int_to_ptr.vmem [resolvable:$true] %s278
          %281 = dma.hbm_to_vmem [thread:$0]  %s3, 16, %s279, [#allocation9]
        $region20: #{tpu_custom_call.1} parent=11 // pred_fallthru
          _
        // Predicated region
        $region21: #{tpu_custom_call.1} parent=11 // pred_check
          %p282 = pneg %p144
        $region22: #{tpu_custom_call.1} parent=11 // pred_check_branch
          %284 = sbr.rel (%p282) target = $region24
        $region23: #{tpu_custom_call.1} parent=11 // pred_region
          %s286 = ssub.s32 16, 16
          %287 = vsyncadd [#allocation9], %s286
          %s289 = sshll.u32 [#allocation10], 4
          %s290 = int_to_ptr.vmem [resolvable:$true] %s289
          %292 = dma.hbm_to_vmem [thread:$0]  %s4, 16, %s290, [#allocation9]
        $region24: #{tpu_custom_call.1} parent=11 // pred_fallthru
          _
        // Predicated region
        $region25: #{tpu_custom_call.1} parent=11 // pred_check
          %p293 = pneg %p165
        $region26: #{tpu_custom_call.1} parent=11 // pred_check_branch
          %295 = sbr.rel (%p293) target = $region28
        $region27: #{tpu_custom_call.1} parent=11 // pred_region
          %s297 = ssub.s32 1024, 1024
          %298 = vsyncadd [#allocation12], %s297
          %s299 = sshll.u32 [#allocation11], 4
          %s300 = int_to_ptr.vmem [resolvable:$true] %s299
          %305 = dma.hbm_to_vmem [thread:$0]  %s5, 1024, %s300, [#allocation12], 64, 64, 4
        $region28: #{tpu_custom_call.1} parent=11 // pred_fallthru
          _
      $region12: #{tpu_custom_call.1} parent=5 // pred_fallthru
        _
      %p306 = scmp.lt.s32.totalorder %s29, 2
      // Predicated region
      $region29: #{tpu_custom_call.1} parent=5 // pred_check
        %p307 = pneg %p306
      $region30: #{tpu_custom_call.1} parent=5 // pred_check_branch
        %309 = sbr.rel (%p307) target = $region32
      $region31: #{tpu_custom_call.1} parent=5 // pred_region
        // Predicated region
        $region33: #{tpu_custom_call.1} parent=31 // pred_check
          %p310 = pneg %p49
        $region34: #{tpu_custom_call.1} parent=31 // pred_check_branch
          %312 = sbr.rel (%p310) target = $region36
        $region35: #{tpu_custom_call.1} parent=31 // pred_region
          %s313 = sand.u32 %s39, 1
          %s314 = scalar_lea.sflag [#allocation3], %s313
          %s315 = sand.u32 %s39, 1
          %s316 = smul.addr %s315, 8
          %s317 = scalar_lea.vmem [#allocation2], %s316
          %s318 = smul.u32 2, %s29
          %s320 = ssub.s32 128, 128
          %321 = vsyncadd %s314, %s320
          %s322 = smul.addr %s318, 64
          %s323 = scalar_lea.hbm %s0, %s322
          %s324 = sshll.u32 %s317, 4
          %s325 = int_to_ptr.vmem [resolvable:$true] %s324
          %330 = dma.hbm_to_vmem [thread:$0]  %s323, 128, %s325, %s314, 64, 64, 4
        $region36: #{tpu_custom_call.1} parent=31 // pred_fallthru
          _
        // Predicated region
        $region37: #{tpu_custom_call.1} parent=31 // pred_check
          %p331 = pneg %p75
        $region38: #{tpu_custom_call.1} parent=31 // pred_check_branch
          %333 = sbr.rel (%p331) target = $region40
        $region39: #{tpu_custom_call.1} parent=31 // pred_region
          %s334 = sand.u32 %s29, 1
          %s335 = scalar_lea.sflag [#allocation6], %s334
          %s336 = sand.u32 %s65, 1
          %s337 = smul.addr %s336, 8
          %s338 = scalar_lea.vmem [#allocation5], %s337
          %s339 = smul.u32 2, %s29
          %s341 = ssub.s32 128, 128
          %342 = vsyncadd %s335, %s341
          %s343 = smul.addr %s339, 64
          %s344 = scalar_lea.hbm %s1, %s343
          %s345 = sshll.u32 %s338, 4
          %s346 = int_to_ptr.vmem [resolvable:$true] %s345
          %351 = dma.hbm_to_vmem [thread:$0]  %s344, 128, %s346, %s335, 64, 64, 4
        $region40: #{tpu_custom_call.1} parent=31 // pred_fallthru
          _
      $region32: #{tpu_custom_call.1} parent=5 // pred_fallthru
        _
      %p352 = scmp.le.s32.totalorder 1, %s29
      %p353 = scmp.lt.s32.totalorder %s29, 3
      %p354 = pnand %p352, %p353
      %p355 = pneg %p354
      // Predicated region
      $region41: #{tpu_custom_call.1} parent=5 // pred_check
        _
      $region42: #{tpu_custom_call.1} parent=5 // pred_check_branch
        %357 = sbr.rel (%p354) target = $region44
      $region43: #{tpu_custom_call.1} parent=5 // pred_region
        %s358 = ssub.s32 %s29, 1
        %s359 = sand.u32 %s42, 1
        %s360 = scalar_lea.sflag [#allocation3], %s359
        %s361 = sand.u32 %s42, 1
        %s362 = smul.addr %s361, 8
        %s363 = scalar_lea.vmem [#allocation2], %s362
        // Predicated region
        $region45: #{tpu_custom_call.1} parent=43 // pred_check
          %p364 = pneg %p55
        $region46: #{tpu_custom_call.1} parent=43 // pred_check_branch
          %366 = sbr.rel (%p364) target = $region48
        $region47: #{tpu_custom_call.1} parent=43 // pred_region
          %367 = dma.done %s360, 128
        $region48: #{tpu_custom_call.1} parent=43 // pred_fallthru
          _
        %s368 = sand.u32 %s34, 1
        %s369 = scalar_lea.sflag [#allocation6], %s368
        %s370 = sand.u32 %s68, 1
        %s371 = smul.addr %s370, 8
        %s372 = scalar_lea.vmem [#allocation5], %s371
        // Predicated region
        $region49: #{tpu_custom_call.1} parent=43 // pred_check
          %p373 = pneg %p81
        $region50: #{tpu_custom_call.1} parent=43 // pred_check_branch
          %375 = sbr.rel (%p373) target = $region52
        $region51: #{tpu_custom_call.1} parent=43 // pred_region
          %376 = dma.done %s369, 128
        $region52: #{tpu_custom_call.1} parent=43 // pred_fallthru
          _
        // Predicated region
        $region53: #{tpu_custom_call.1} parent=43 // pred_check
          %p377 = pneg %p102
        $region54: #{tpu_custom_call.1} parent=43 // pred_check_branch
          %379 = sbr.rel (%p377) target = $region56
        $region55: #{tpu_custom_call.1} parent=43 // pred_region
          %380 = dma.done [#allocation6], 1024
        $region56: #{tpu_custom_call.1} parent=43 // pred_fallthru
          _
        // Predicated region
        $region57: #{tpu_custom_call.1} parent=43 // pred_check
          %p381 = pneg %p123
        $region58: #{tpu_custom_call.1} parent=43 // pred_check_branch
          %383 = sbr.rel (%p381) target = $region60
        $region59: #{tpu_custom_call.1} parent=43 // pred_region
          %384 = dma.done [#allocation9], 16
        $region60: #{tpu_custom_call.1} parent=43 // pred_fallthru
          _
        // Predicated region
        $region61: #{tpu_custom_call.1} parent=43 // pred_check
          %p385 = pneg %p144
        $region62: #{tpu_custom_call.1} parent=43 // pred_check_branch
          %387 = sbr.rel (%p385) target = $region64
        $region63: #{tpu_custom_call.1} parent=43 // pred_region
          %388 = dma.done [#allocation9], 16
        $region64: #{tpu_custom_call.1} parent=43 // pred_fallthru
          _
        // Predicated region
        $region65: #{tpu_custom_call.1} parent=43 // pred_check
          %p389 = pneg %p165
        $region66: #{tpu_custom_call.1} parent=43 // pred_check_branch
          %391 = sbr.rel (%p389) target = $region68
        $region67: #{tpu_custom_call.1} parent=43 // pred_region
          %392 = dma.done [#allocation12], 1024
        $region68: #{tpu_custom_call.1} parent=43 // pred_fallthru
          _
        %s393 = sand.u32 %s42, 1
        %s394 = scalar_lea.sflag [#allocation3], %s393
        %s395 = sand.u32 %s42, 1
        %s396 = smul.addr %s395, 8
        %s397 = scalar_lea.vmem [#allocation2], %s396
        %p398 = pneg %p55
        %p399 = pneg %p52
        %s400 = sand.u32 %s34, 1
        %s401 = scalar_lea.sflag [#allocation6], %s400
        %s402 = sand.u32 %s68, 1
        %s403 = smul.addr %s402, 8
        %s404 = scalar_lea.vmem [#allocation5], %s403
        %p405 = pneg %p81
        %p406 = pneg %p78
        %p407 = pneg %p102
        %p408 = pneg %p99
        %p409 = pneg %p123
        %p410 = pneg %p120
        %p411 = pneg %p144
        %p412 = pneg %p141
        %p413 = pneg %p165
        %p414 = pneg %p162
        %p415 = pneg %p191
        %p416 = pneg %p188
        %s417 = sand.u32 %s178, 1
        %s418 = scalar_lea.sflag [#allocation4], %s417
        %s419 = sand.u32 %s178, 1
        %s420 = smul.addr %s419, 16
        %s421 = scalar_lea.vmem [#allocation13], %s420
        %p422 = pneg %p217
        %p423 = pneg %p214
        %s424 = sand.u32 %s34, 1
        %s425 = scalar_lea.sflag [#allocation15], %s424
        %s426 = sand.u32 %s204, 1
        %s427 = smul.addr %s426, 16
        %s428 = scalar_lea.vmem [#allocation14], %s427
        %p429 = pneg %p243
        %p430 = pneg %p240
        %s431 = sand.u32 %s34, 1
        %s432 = scalar_lea.sflag [#allocation15], %s431
        %s433 = sand.u32 %s230, 1
        %s434 = smul.addr %s433, 4
        %s435 = scalar_lea.vmem [#allocation16], %s434
        %s436 = smul.u32 2, %s34
        %s437 = smul.u32 2, %s34
        %s438 = smul.u32 2, %s34
        %s439 = smul.u32 2, %s34
        %v441 = vld [vmem:[%s363] sm:$0xf]
        %v442 = vld [vmem:[%s363 + $0x4] sm:$0xf]
        %v443 = vld [vmem:[#allocation7] sm:$0xf]
        %v444 = vld [vmem:[#allocation7 + $0x4] sm:$0xf]
        %v445 = vld [vmem:[#allocation7 + $0x8] sm:$0xf]
        %v446 = vld [vmem:[#allocation7 + $0xc] sm:$0xf]
        %v447 = vld [vmem:[#allocation7 + $0x10] sm:$0xf]
        %v448 = vld [vmem:[#allocation7 + $0x14] sm:$0xf]
        %v449 = vld [vmem:[#allocation7 + $0x18] sm:$0xf]
        %v450 = vld [vmem:[#allocation7 + $0x1c] sm:$0xf]
        %v451 = vld [vmem:[#allocation7 + $0x20] sm:$0xf]
        %v452 = vld [vmem:[#allocation7 + $0x24] sm:$0xf]
        %v453 = vld [vmem:[#allocation7 + $0x28] sm:$0xf]
        %v454 = vld [vmem:[#allocation7 + $0x2c] sm:$0xf]
        %v455 = vld [vmem:[#allocation7 + $0x30] sm:$0xf]
        %v456 = vld [vmem:[#allocation7 + $0x34] sm:$0xf]
        %v457 = vld [vmem:[#allocation7 + $0x38] sm:$0xf]
        %v458 = vld [vmem:[#allocation7 + $0x3c] sm:$0xf]
        %v459 = vld [vmem:[#allocation8] sm:$0x1]
        %v461 = vlaneseq
        %v462 = vshrl.u32 %v461, 7
        %v463 = vsub.s32 0, %v462
        %v464 = vrot.slane %v459, %v463
        %v468 = vunpack.c.l.b16 %v441
        %v469 = vunpack.c.l.b16 %v442
        %v470 = vpack.c.b16 %v469, %v468
        %v488 = vunpack.c.l.b16 %v443
        %v489 = vunpack.c.l.b16 %v444
        %v490 = vunpack.c.l.b16 %v445
        %v491 = vunpack.c.l.b16 %v446
        %v492 = vunpack.c.l.b16 %v447
        %v493 = vunpack.c.l.b16 %v448
        %v494 = vunpack.c.l.b16 %v449
        %v495 = vunpack.c.l.b16 %v450
        %v496 = vunpack.c.l.b16 %v451
        %v497 = vunpack.c.l.b16 %v452
        %v498 = vunpack.c.l.b16 %v453
        %v499 = vunpack.c.l.b16 %v454
        %v500 = vunpack.c.l.b16 %v455
        %v501 = vunpack.c.l.b16 %v456
        %v502 = vunpack.c.l.b16 %v457
        %v503 = vunpack.c.l.b16 %v458
        %v504 = vpack.c.b16 %v489, %v488
        %v505 = vpack.c.b16 %v491, %v490
        %v506 = vpack.c.b16 %v493, %v492
        %v507 = vpack.c.b16 %v495, %v494
        %v508 = vpack.c.b16 %v497, %v496
        %v509 = vpack.c.b16 %v499, %v498
        %v510 = vpack.c.b16 %v501, %v500
        %v511 = vpack.c.b16 %v503, %v502
        %520 = vmatprep.subr.bf16.mxu0 0
        %521 = vmatpush1.bf16.msra.mxu0 %v504
        %522 = vmatprep.subr.bf16.mxu0 0
        %523 = vmatpush1.bf16.msra.mxu0 %v505
        %524 = vmatprep.subr.bf16.mxu0 0
        %525 = vmatpush1.bf16.msra.mxu0 %v506
        %526 = vmatprep.subr.bf16.mxu0 0
        %527 = vmatpush1.bf16.msra.mxu0 %v507
        %528 = vmatprep.subr.bf16.mxu0 0
        %529 = vmatpush1.bf16.msra.mxu0 %v508
        %530 = vmatprep.subr.bf16.mxu0 0
        %531 = vmatpush1.bf16.msra.mxu0 %v509
        %532 = vmatprep.subr.bf16.mxu0 0
        %533 = vmatpush1.bf16.msra.mxu0 %v510
        %534 = vmatprep.subr.bf16.mxu0 0
        %535 = vmatpush1.bf16.msra.mxu0 %v511
        %536 = vmatprep.subr.bf16.mxu0 0
        %537 = vmatpush1.bf16.msra.mxu0 0
        %538 = vmatprep.subr.bf16.mxu0 0
        %539 = vmatpush1.bf16.msra.mxu0 0
        %540 = vmatprep.subr.bf16.mxu0 0
        %541 = vmatpush1.bf16.msra.mxu0 0
        %542 = vmatprep.subr.bf16.mxu0 0
        %543 = vmatpush1.bf16.msra.mxu0 0
        %544 = vmatprep.subr.bf16.mxu0 0
        %545 = vmatpush1.bf16.msra.mxu0 0
        %546 = vmatprep.subr.bf16.mxu0 0
        %547 = vmatpush1.bf16.msra.mxu0 0
        %548 = vmatprep.subr.bf16.mxu0 0
        %549 = vmatpush1.bf16.msra.mxu0 0
        %550 = vmatprep.subr.bf16.mxu0 0
        %551 = vmatpush1.bf16.msra.mxu0 0
        %552 = vmatprep.mubr.bf16.mxu0 0
        %553 = vmatmul.mubr.bf16.gmra.mrb[0].mxu0 %v470
        %v554 = vpop.f32.mrb[0].mxu0
        %v555 = vadd.f32 %v464, %v554
        %v556 = vpop.f32.mrb[0].mxu0
        %v557 = vpop.f32.mrb[0].mxu0
        %v558 = vadd.f32 %v464, %v557
        %v559 = vpop.f32.mrb[0].mxu0
        %560 = vdwg.mxu0
        %v561 = vmax.f32 %v555, 0.0
        %v562 = vmax.f32 %v558, 0.0
        %v563 = vld [vmem:[%s372] sm:$0xf]
        %v564 = vld [vmem:[%s372 + $0x4] sm:$0xf]
        %v565 = vunpack.c.l.bf16 %v563
        %v566 = vunpack.c.l.bf16 %v564
        %v567 = vadd.f32 %v561, %v565
        %v568 = vadd.f32 %v562, %v566
        %v569 = vpack.c.bf16 %v568, %v567
        %v570 = vld [vmem:[#allocation11] sm:$0xf]
        %v571 = vld [vmem:[#allocation11 + $0x4] sm:$0xf]
        %v572 = vld [vmem:[#allocation11 + $0x8] sm:$0xf]
        %v573 = vld [vmem:[#allocation11 + $0xc] sm:$0xf]
        %v574 = vld [vmem:[#allocation11 + $0x10] sm:$0xf]
        %v575 = vld [vmem:[#allocation11 + $0x14] sm:$0xf]
        %v576 = vld [vmem:[#allocation11 + $0x18] sm:$0xf]
        %v577 = vld [vmem:[#allocation11 + $0x1c] sm:$0xf]
        %v578 = vld [vmem:[#allocation11 + $0x20] sm:$0xf]
        %v579 = vld [vmem:[#allocation11 + $0x24] sm:$0xf]
        %v580 = vld [vmem:[#allocation11 + $0x28] sm:$0xf]
        %v581 = vld [vmem:[#allocation11 + $0x2c] sm:$0xf]
        %v582 = vld [vmem:[#allocation11 + $0x30] sm:$0xf]
        %v583 = vld [vmem:[#allocation11 + $0x34] sm:$0xf]
        %v584 = vld [vmem:[#allocation11 + $0x38] sm:$0xf]
        %v585 = vld [vmem:[#allocation11 + $0x3c] sm:$0xf]
        %v586 = vld [vmem:[#allocation10] sm:$0x1]
        %v588 = vlaneseq
        %v589 = vshrl.u32 %v588, 7
        %v590 = vsub.s32 0, %v589
        %v591 = vrot.slane %v586, %v590
        %v609 = vunpack.c.l.b16 %v570
        %v610 = vunpack.c.l.b16 %v571
        %v611 = vunpack.c.l.b16 %v572
        %v612 = vunpack.c.l.b16 %v573
        %v613 = vunpack.c.l.b16 %v574
        %v614 = vunpack.c.l.b16 %v575
        %v615 = vunpack.c.l.b16 %v576
        %v616 = vunpack.c.l.b16 %v577
        %v617 = vunpack.c.l.b16 %v578
        %v618 = vunpack.c.l.b16 %v579
        %v619 = vunpack.c.l.b16 %v580
        %v620 = vunpack.c.l.b16 %v581
        %v621 = vunpack.c.l.b16 %v582
        %v622 = vunpack.c.l.b16 %v583
        %v623 = vunpack.c.l.b16 %v584
        %v624 = vunpack.c.l.b16 %v585
        %v625 = vpack.c.b16 %v610, %v609
        %v626 = vpack.c.b16 %v612, %v611
        %v627 = vpack.c.b16 %v614, %v613
        %v628 = vpack.c.b16 %v616, %v615
        %v629 = vpack.c.b16 %v618, %v617
        %v630 = vpack.c.b16 %v620, %v619
        %v631 = vpack.c.b16 %v622, %v621
        %v632 = vpack.c.b16 %v624, %v623
        %641 = vmatprep.subr.bf16.mxu0 0
        %642 = vmatpush1.bf16.msra.mxu0 %v625
        %643 = vmatprep.subr.bf16.mxu0 0
        %644 = vmatpush1.bf16.msra.mxu0 %v626
        %645 = vmatprep.subr.bf16.mxu0 0
        %646 = vmatpush1.bf16.msra.mxu0 %v627
        %647 = vmatprep.subr.bf16.mxu0 0
        %648 = vmatpush1.bf16.msra.mxu0 %v628
        %649 = vmatprep.subr.bf16.mxu0 0
        %650 = vmatpush1.bf16.msra.mxu0 %v629
        %651 = vmatprep.subr.bf16.mxu0 0
        %652 = vmatpush1.bf16.msra.mxu0 %v630
        %653 = vmatprep.subr.bf16.mxu0 0
        %654 = vmatpush1.bf16.msra.mxu0 %v631
        %655 = vmatprep.subr.bf16.mxu0 0
        %656 = vmatpush1.bf16.msra.mxu0 %v632
        %657 = vmatprep.subr.bf16.mxu0 0
        %658 = vmatpush1.bf16.msra.mxu0 0
        %659 = vmatprep.subr.bf16.mxu0 0
        %660 = vmatpush1.bf16.msra.mxu0 0
        %661 = vmatprep.subr.bf16.mxu0 0
        %662 = vmatpush1.bf16.msra.mxu0 0
        %663 = vmatprep.subr.bf16.mxu0 0
        %664 = vmatpush1.bf16.msra.mxu0 0
        %665 = vmatprep.subr.bf16.mxu0 0
        %666 = vmatpush1.bf16.msra.mxu0 0
        %667 = vmatprep.subr.bf16.mxu0 0
        %668 = vmatpush1.bf16.msra.mxu0 0
        %669 = vmatprep.subr.bf16.mxu0 0
        %670 = vmatpush1.bf16.msra.mxu0 0
        %671 = vmatprep.subr.bf16.mxu0 0
        %672 = vmatpush1.bf16.msra.mxu0 0
        %673 = vmatprep.mubr.bf16.mxu0 0
        %674 = vmatmul.mubr.bf16.gmra.mrb[0].mxu0 %v569
        %v675 = vpop.f32.mrb[0].mxu0
        %v676 = vadd.f32 %v591, %v675
        %v677 = vpop.f32.mrb[0].mxu0
        %v678 = vpop.f32.mrb[0].mxu0
        %v679 = vadd.f32 %v591, %v678
        %v680 = vpop.f32.mrb[0].mxu0
        %681 = vdwg.mxu0
        %682 = vst [vmem:[%s421] sm:$0xff] %v561
        %683 = vst [vmem:[%s421 + $0x8] sm:$0xff] %v562
        %684 = vst [vmem:[%s428] sm:$0xff] %v676
        %685 = vst [vmem:[%s428 + $0x8] sm:$0xff] %v679
        %v686 = vunpack.c.l.bf16 %v441
        %v687 = vunpack.c.l.bf16 %v442
        %v688 = vsub.f32 %v676, %v686
        %v689 = vsub.f32 %v679, %v687
        %v690 = vadd.f32 %v561, %v562
        %v691 = vrot.slane %v690, 4
        %v692 = vadd.f32 %v690, %v691
        %v693 = vrot.slane %v692, 2
        %v694 = vadd.f32 %v692, %v693
        %v695 = vrot.slane %v694, 1
        %v696 = vadd.f32 %v694, %v695
        %vm697 = vcmp.gt.f32.partialorder %v561, 1e-08
        %vm698 = vcmp.gt.f32.partialorder %v562, 1e-08
        %v699 = vsel %vm697, 1, 0
        %v700 = vsel %vm698, 1, 0
        %v701 = vcvt.s32.f32 %v699
        %v702 = vcvt.s32.f32 %v700
        %v703 = vadd.f32 %v701, %v702
        %v704 = vrot.slane %v703, 4
        %v705 = vadd.f32 %v703, %v704
        %v706 = vrot.slane %v705, 2
        %v707 = vadd.f32 %v705, %v706
        %v708 = vrot.slane %v707, 1
        %v709 = vadd.f32 %v707, %v708
        %v710 = vmul.f32 %v688, %v688
        %v711 = vmul.f32 %v689, %v689
        %712 = vadd.xlane.f32.xlu0 %v710
        %v713 = vpop.xlane.xlu0 %712
        %714 = vadd.xlane.f32.xlu0 %v711
        %v715 = vpop.xlane.xlu0 %714
        %v716 = vadd.f32 %v713, %v715
        %v717 = vrot.slane %v716, 4
        %v718 = vadd.f32 %v716, %v717
        %v719 = vrot.slane %v718, 2
        %v720 = vadd.f32 %v718, %v719
        %v721 = vrot.slane %v720, 1
        %v722 = vadd.f32 %v720, %v721
        %v723 = vadd.f32 %v722, 0.0
        %vm724 = vcmask 1040384
        %v725 = vsel %vm724, %v696, %v709
        %vm726 = vcmask 1041408
        %v727 = vsel %vm726, %v725, %v723
        %728 = vst [vmem:[%s435] sm:$0x7] %v727
        %s729 = sand.u32 %s178, 1
        %s730 = scalar_lea.sflag [#allocation4], %s729
        %s731 = sand.u32 %s178, 1
        %s732 = smul.addr %s731, 16
        %s733 = scalar_lea.vmem [#allocation13], %s732
        %s734 = sand.u32 %s34, 1
        %s735 = scalar_lea.sflag [#allocation15], %s734
        %s736 = sand.u32 %s204, 1
        %s737 = smul.addr %s736, 16
        %s738 = scalar_lea.vmem [#allocation14], %s737
        %s739 = sand.u32 %s34, 1
        %s740 = scalar_lea.sflag [#allocation15], %s739
        %s741 = sand.u32 %s230, 1
        %s742 = smul.addr %s741, 4
        %s743 = scalar_lea.vmem [#allocation16], %s742
        // Predicated region
        $region69: #{tpu_custom_call.1} parent=43 // pred_check
          %p744 = pneg %p188
        $region70: #{tpu_custom_call.1} parent=43 // pred_check_branch
          %746 = sbr.rel (%p744) target = $region72
        $region71: #{tpu_custom_call.1} parent=43 // pred_region
          %s747 = smul.u32 2, %s34
          %s749 = ssub.s32 256, 256
          %750 = vsyncadd %s730, %s749
          %s751 = smul.addr %s747, 128
          %s752 = scalar_lea.hbm %s6, %s751
          %s753 = sshll.u32 %s733, 4
          %s754 = int_to_ptr.vmem [resolvable:$true] %s753
          %759 = dma.vmem_to_hbm [thread:$0]  %s754, 256, %s752, %s730, 128, 128, 8
        $region72: #{tpu_custom_call.1} parent=43 // pred_fallthru
          _
        // Predicated region
        $region73: #{tpu_custom_call.1} parent=43 // pred_check
          %p760 = pneg %p214
        $region74: #{tpu_custom_call.1} parent=43 // pred_check_branch
          %762 = sbr.rel (%p760) target = $region76
        $region75: #{tpu_custom_call.1} parent=43 // pred_region
          %s763 = smul.u32 2, %s34
          %s765 = ssub.s32 256, 256
          %766 = vsyncadd %s735, %s765
          %s767 = smul.addr %s763, 128
          %s768 = scalar_lea.hbm %s7, %s767
          %s769 = sshll.u32 %s738, 4
          %s770 = int_to_ptr.vmem [resolvable:$true] %s769
          %775 = dma.vmem_to_hbm [thread:$0]  %s770, 256, %s768, %s735, 128, 128, 8
        $region76: #{tpu_custom_call.1} parent=43 // pred_fallthru
          _
        // Predicated region
        $region77: #{tpu_custom_call.1} parent=43 // pred_check
          %p776 = pneg %p240
        $region78: #{tpu_custom_call.1} parent=43 // pred_check_branch
          %778 = sbr.rel (%p776) target = $region80
        $region79: #{tpu_custom_call.1} parent=43 // pred_region
          %s780 = ssub.s32 64, 64
          %781 = vsyncadd %s740, %s780
          %s782 = smul.addr %s34, 64
          %s783 = scalar_lea.hbm %s8, %s782
          %s785 = sshll.u32 %s743, 4
          %s786 = int_to_ptr.vmem [resolvable:$true] %s785
          %788 = dma.vmem_to_hbm [thread:$0]  %s786, 64, %s783, %s740
        $region80: #{tpu_custom_call.1} parent=43 // pred_fallthru
          _
      $region44: #{tpu_custom_call.1} parent=5 // pred_fallthru
        _
      %p789 = scmp.le.s32.totalorder 2, %s29
      // Predicated region
      $region81: #{tpu_custom_call.1} parent=5 // pred_check
        %p790 = pneg %p789
      $region82: #{tpu_custom_call.1} parent=5 // pred_check_branch
        %792 = sbr.rel (%p790) target = $region84
      $region83: #{tpu_custom_call.1} parent=5 // pred_region
        %s793 = ssub.s32 %s29, 2
        // Predicated region
        $region85: #{tpu_custom_call.1} parent=83 // pred_check
          %p794 = pneg %p194
        $region86: #{tpu_custom_call.1} parent=83 // pred_check_branch
          %796 = sbr.rel (%p794) target = $region88
        $region87: #{tpu_custom_call.1} parent=83 // pred_region
          %s797 = sand.u32 %s179, 1
          %s798 = scalar_lea.sflag [#allocation4], %s797
          %s799 = sand.u32 %s179, 1
          %s800 = smul.addr %s799, 16
          %s801 = scalar_lea.vmem [#allocation13], %s800
          %802 = dma.done %s798, 256
        $region88: #{tpu_custom_call.1} parent=83 // pred_fallthru
          _
        // Predicated region
        $region89: #{tpu_custom_call.1} parent=83 // pred_check
          %p803 = pneg %p220
        $region90: #{tpu_custom_call.1} parent=83 // pred_check_branch
          %805 = sbr.rel (%p803) target = $region92
        $region91: #{tpu_custom_call.1} parent=83 // pred_region
          %s806 = sand.u32 %s35, 1
          %s807 = scalar_lea.sflag [#allocation15], %s806
          %s808 = sand.u32 %s205, 1
          %s809 = smul.addr %s808, 16
          %s810 = scalar_lea.vmem [#allocation14], %s809
          %811 = dma.done %s807, 256
        $region92: #{tpu_custom_call.1} parent=83 // pred_fallthru
          _
        // Predicated region
        $region93: #{tpu_custom_call.1} parent=83 // pred_check
          %p812 = pneg %p246
        $region94: #{tpu_custom_call.1} parent=83 // pred_check_branch
          %814 = sbr.rel (%p812) target = $region96
        $region95: #{tpu_custom_call.1} parent=83 // pred_region
          %s815 = sand.u32 %s35, 1
          %s816 = scalar_lea.sflag [#allocation15], %s815
          %s817 = sand.u32 %s231, 1
          %s818 = smul.addr %s817, 4
          %s819 = scalar_lea.vmem [#allocation16], %s818
          %820 = dma.done %s816, 64
        $region96: #{tpu_custom_call.1} parent=83 // pred_fallthru
          _
      $region84: #{tpu_custom_call.1} parent=5 // pred_fallthru
        _
    $region6: #{tpu_custom_call.1} parent=1 // loop_footer
      %s33 = sadd.s32 1, %s29
    $region7: #{tpu_custom_call.1} parent=1 // loop_footer_branch
      %28 = sbr.rel target = $region3
    $region8: #{tpu_custom_call.1} parent=1 // loop_exit
      _
    %821 = vsyncpa [#allocation3], 1
    %s822 = scalar_lea.sflag [#allocation3], 1
    %823 = vsyncpa %s822, 1
    %824 = vsyncpa [#allocation6], 1
    %s825 = scalar_lea.sflag [#allocation6], 1
    %826 = vsyncpa %s825, 1
    %827 = vsyncpa [#allocation9], 1
    %828 = vsyncpa [#allocation12], 1
    %829 = vsyncpa [#allocation4], 1
    %s830 = scalar_lea.sflag [#allocation4], 1
    %831 = vsyncpa %s830, 1
    %832 = vsyncpa [#allocation15], 1
    %s833 = scalar_lea.sflag [#allocation15], 1
    %834 = vsyncpa %s833, 1

</llo_original>
